<compile_context>
chip_gen: v6e
topology: v6e:2x2x1
jax: 0.10.0
libtpu: 0.0.40
codegen_flags: <defaults>
</compile_context>

<pallas_src>
import jax
import jax.numpy as jnp
from jax import lax
from jax.experimental import pallas as pl
from jax.experimental.pallas import tpu as pltpu


def lstm_fc_kernel(xw0_ref, whh0_ref, w1_ref, b1_ref, wfc_ref, bfc_ref, out_ref):
    T, B, G = xw0_ref.shape          # G = 4H
    H = G // 4

    whh0 = whh0_ref[...]             # (H, 4H)  bf16
    w1 = w1_ref[...]                 # (2H, 4H) bf16  (= [W_ih1; W_hh1])
    b1 = b1_ref[...]                 # (1, 4H)  f32   (= b_ih1 + b_hh1)

    def gates_to_hc(gates, c_prev):
        # gate order [i, f, o, g]: one sigmoid on contiguous 3H, tanh on last H
        sg = jax.nn.sigmoid(gates[:, :3 * H])
        i = sg[:, 0 * H:1 * H]
        f = sg[:, 1 * H:2 * H]
        o = sg[:, 2 * H:3 * H]
        g = jnp.tanh(gates[:, 3 * H:4 * H])
        c = f * c_prev + i * g
        h = o * jnp.tanh(c)
        return h, c

    def step(t, carry):
        h0, c0, h1, c1 = carry
        # layer 0: hoisted input projection + recurrent matmul (K=H)
        gates0 = xw0_ref[t] + jnp.dot(h0.astype(jnp.bfloat16), whh0,
                                      preferred_element_type=jnp.float32)
        h0n, c0n = gates_to_hc(gates0, c0)
        # layer 1: single fused K=2H matmul over [h0_new, h1]
        h01 = jnp.concatenate([h0n, h1], axis=-1).astype(jnp.bfloat16)   # (B, 2H)
        gates1 = jnp.dot(h01, w1, preferred_element_type=jnp.float32) + b1
        h1n, c1n = gates_to_hc(gates1, c1)
        return (h0n, c0n, h1n, c1n)

    zeros = jnp.zeros((B, H), jnp.float32)       # h0 = c0 = 0, as in Model.forward
    _, _, h1, _ = lax.fori_loop(0, T, step, (zeros, zeros, zeros, zeros),
                                unroll=True)

    # fc(out[:, -1, :]) — output padded to lane-dense width (>= 128)
    out_ref[...] = (jnp.dot(h1.astype(jnp.bfloat16), wfc_ref[...],
                            preferred_element_type=jnp.float32)
                    + bfc_ref[...])


def _reorder_gates(a, H):
    """Permute the 4H axis from PyTorch [i, f, g, o] to kernel order [i, f, o, g]."""
    return jnp.concatenate(
        [a[..., 0 * H:2 * H], a[..., 3 * H:4 * H], a[..., 2 * H:3 * H]], axis=-1)


def model_forward(x, params):
    """x: (B, T, I) float32 (PyTorch batch_first layout). Returns (B, num_keys)."""
    B, T, I = x.shape
    H = params["whh0"].shape[0]
    K = params["wfc"].shape[1]
    KP = max(128, ((K + 127) // 128) * 128)      # lane-dense padded fc width

    ro = lambda a: _reorder_gates(a, H)

    # Hoisted layer-0 input projection for every timestep (f32, ~128 KiB).
    x_tm = jnp.transpose(x, (1, 0, 2))                               # (T, B, 1)
    xw0 = (x_tm * ro(params["wih0"]) + ro(params["b0"])).astype(jnp.float32)  # (T, B, 4H)

    # Recurrent weights, bf16 for a single native MXU pass (f32 accumulation).
    whh0 = ro(params["whh0"]).astype(jnp.bfloat16)                   # (H, 4H)
    w1 = jnp.concatenate([ro(params["wih1"]), ro(params["whh1"])],
                         axis=0).astype(jnp.bfloat16)                # (2H, 4H)
    b1 = ro(params["b1"]).astype(jnp.float32)                        # (1, 4H)

    # fc head padded to KP lanes.
    wfc = jnp.zeros((H, KP), jnp.bfloat16).at[:, :K].set(
        params["wfc"].astype(jnp.bfloat16))
    bfc = jnp.zeros((1, KP), jnp.float32).at[:, :K].set(params["bfc"])

    vmem = pl.BlockSpec(memory_space=pltpu.MemorySpace.VMEM)
    out_padded = pl.pallas_call(
        lstm_fc_kernel,
        out_shape=jax.ShapeDtypeStruct((B, KP), jnp.float32),
        in_specs=[vmem] * 6,
        out_specs=vmem,
    )(xw0, whh0, w1, b1, wfc, bfc)
    return out_padded[:, :K]


def init_params(key, input_size, hidden_size, num_keys):
    """Deterministic init, PyTorch-style U(-1/sqrt(H), 1/sqrt(H)); weights stored
    pre-transposed as (in_features, 4H) / (H, num_keys), PyTorch gate order."""
    H = hidden_size
    bound = 1.0 / jnp.sqrt(jnp.float32(H))
    ks = jax.random.split(key, 10)
    u = lambda k, shape: jax.random.uniform(k, shape, jnp.float32, -bound, bound)
    return {
        # layer 0
        "wih0": u(ks[0], (input_size, 4 * H)),
        "whh0": u(ks[1], (H, 4 * H)),
        "b0":   u(ks[2], (1, 4 * H)) + u(ks[3], (1, 4 * H)),   # b_ih + b_hh
        # layer 1
        "wih1": u(ks[4], (H, 4 * H)),
        "whh1": u(ks[5], (H, 4 * H)),
        "b1":   u(ks[6], (1, 4 * H)) + u(ks[7], (1, 4 * H)),
        # fc
        "wfc":  u(ks[8], (H, num_keys)),
        "bfc":  u(ks[9], (1, num_keys)),
    }


def reference_forward(x, params):
    """Pure-JAX f32 reference matching the PyTorch forward semantics."""
    H = params["whh0"].shape[0]
    B = x.shape[0]

    def cell(x_in, h, c, wih, whh, b):
        raw = x_in @ wih + h @ whh + b
        i = jax.nn.sigmoid(raw[:, 0 * H:1 * H])
        f = jax.nn.sigmoid(raw[:, 1 * H:2 * H])
        g = jnp.tanh(raw[:, 2 * H:3 * H])
        o = jax.nn.sigmoid(raw[:, 3 * H:4 * H])
        c = f * c + i * g
        h = o * jnp.tanh(c)
        return h, c

    def step(carry, x_t):
        h0, c0, h1, c1 = carry
        h0, c0 = cell(x_t, h0, c0, params["wih0"], params["whh0"], params["b0"])
        h1, c1 = cell(h0, h1, c1, params["wih1"], params["whh1"], params["b1"])
        return (h0, c0, h1, c1), None

    z = jnp.zeros((B, H), jnp.float32)
    (_, _, h1, _), _ = lax.scan(step, (z, z, z, z), jnp.transpose(x, (1, 0, 2)))
    return h1 @ params["wfc"] + params["bfc"]


if __name__ == "__main__":
    # Module constants: input_size=1, hidden_size=128, num_layers=2; num_keys ctor arg.
    batch, seq_len, input_size, hidden_size, num_keys = 8, 8, 1, 128, 32

    key = jax.random.PRNGKey(0)
    k_x, k_p = jax.random.split(key)
    x = jax.random.normal(k_x, (batch, seq_len, input_size), jnp.float32)
    params = init_params(k_p, input_size, hidden_size, num_keys)

    fwd = jax.jit(model_forward)
    out = jax.block_until_ready(fwd(x, params))
    ref = jax.block_until_ready(reference_forward(x, params))

    assert out.shape == (batch, num_keys), out.shape
    # Matmul operands run in bf16 (f32 accumulation) -> looser tolerance vs f32 oracle.
    max_err = float(jnp.max(jnp.abs(out - ref)))
    assert jnp.allclose(out, ref, atol=3e-2, rtol=3e-2), max_err
    print("KERNEL_OK")
</pallas_src>

<mosaic_0001>
module attributes {stable_mosaic.version = 11 : i64} {
  func.func @lstm_fc_kernel(%arg0: memref<8x8x512xf32, #tpu.memory_space<vmem>>, %arg1: memref<128x512xbf16, #tpu.memory_space<vmem>>, %arg2: memref<256x512xbf16, #tpu.memory_space<vmem>>, %arg3: memref<1x512xf32, #tpu.memory_space<vmem>>, %arg4: memref<128x128xbf16, #tpu.memory_space<vmem>>, %arg5: memref<1x128xf32, #tpu.memory_space<vmem>>, %arg6: memref<8x128xf32, #tpu.memory_space<vmem>>) attributes {dimension_semantics = [], scalar_prefetch = 0 : i64, scratch_operands = 0 : i64, tpu.core_type = #tpu.core_type<tc>} {
    %c0 = arith.constant 0 : index
    %c0_0 = arith.constant 0 : index
    %0 = vector.load %arg1[%c0, %c0_0] : memref<128x512xbf16, #tpu.memory_space<vmem>>, vector<128x512xbf16>
    %c0_1 = arith.constant 0 : index
    %c0_2 = arith.constant 0 : index
    %1 = vector.load %arg2[%c0_1, %c0_2] : memref<256x512xbf16, #tpu.memory_space<vmem>>, vector<256x512xbf16>
    %c0_3 = arith.constant 0 : index
    %c0_4 = arith.constant 0 : index
    %2 = vector.load %arg3[%c0_3, %c0_4] : memref<1x512xf32, #tpu.memory_space<vmem>>, vector<1x512xf32>
    %cst = arith.constant 0.000000e+00 : f32
    %3 = vector.broadcast %cst : f32 to vector<8x128xf32>
    %c0_i32 = arith.constant 0 : i32
    %4 = arith.index_cast %c0_i32 : i32 to index
    %c0_5 = arith.constant 0 : index
    %c0_6 = arith.constant 0 : index
    %5 = vector.load %arg0[%4, %c0_5, %c0_6] : memref<8x8x512xf32, #tpu.memory_space<vmem>>, vector<1x8x512xf32>
    %6 = vector.shape_cast %5 : vector<1x8x512xf32> to vector<8x512xf32>
    %7 = arith.truncf %3 : vector<8x128xf32> to vector<8x128xbf16>
    %cst_7 = arith.constant dense<0.000000e+00> : vector<8x512xf32>
    %8 = tpu.matmul %7, %0, %cst_7 {dimension_numbers = #tpu.dot_dimension_numbers<[1], [0], [0], [1], [0, 0, 1, 1], [], []>} : vector<8x128xbf16>, vector<128x512xbf16>, vector<8x512xf32> -> vector<8x512xf32>
    %9 = arith.addf %6, %8 : vector<8x512xf32>
    %10 = vector.extract_strided_slice %9 {offsets = [0, 0], sizes = [8, 384], strides = [1, 1]} : vector<8x512xf32> to vector<8x384xf32>
    %11 = arith.negf %10 : vector<8x384xf32>
    %12 = math.exp %11 : vector<8x384xf32>
    %cst_8 = arith.constant 1.000000e+00 : f32
    %13 = vector.broadcast %cst_8 : f32 to vector<8x384xf32>
    %14 = arith.addf %13, %12 : vector<8x384xf32>
    %15 = arith.divf %13, %14 : vector<8x384xf32>
    %16 = vector.extract_strided_slice %15 {offsets = [0, 0], sizes = [8, 128], strides = [1, 1]} : vector<8x384xf32> to vector<8x128xf32>
    %17 = vector.extract_strided_slice %15 {offsets = [0, 128], sizes = [8, 128], strides = [1, 1]} : vector<8x384xf32> to vector<8x128xf32>
    %18 = vector.extract_strided_slice %15 {offsets = [0, 256], sizes = [8, 128], strides = [1, 1]} : vector<8x384xf32> to vector<8x128xf32>
    %19 = vector.extract_strided_slice %9 {offsets = [0, 384], sizes = [8, 128], strides = [1, 1]} : vector<8x512xf32> to vector<8x128xf32>
    %20 = math.tanh %19 : vector<8x128xf32>
    %21 = arith.mulf %17, %3 : vector<8x128xf32>
    %22 = arith.mulf %16, %20 : vector<8x128xf32>
    %23 = arith.addf %21, %22 : vector<8x128xf32>
    %24 = math.tanh %23 : vector<8x128xf32>
    %25 = arith.mulf %18, %24 : vector<8x128xf32>
    %26 = tpu.concatenate %25, %3 in 1 : vector<8x128xf32>, vector<8x128xf32> -> vector<8x256xf32>
    %27 = arith.truncf %26 : vector<8x256xf32> to vector<8x256xbf16>
    %cst_9 = arith.constant dense<0.000000e+00> : vector<8x512xf32>
    %28 = tpu.matmul %27, %1, %cst_9 {dimension_numbers = #tpu.dot_dimension_numbers<[1], [0], [0], [1], [0, 0, 1, 1], [], []>} : vector<8x256xbf16>, vector<256x512xbf16>, vector<8x512xf32> -> vector<8x512xf32>
    %29 = vector.broadcast %2 : vector<1x512xf32> to vector<8x512xf32>
    %30 = arith.addf %28, %29 : vector<8x512xf32>
    %31 = vector.extract_strided_slice %30 {offsets = [0, 0], sizes = [8, 384], strides = [1, 1]} : vector<8x512xf32> to vector<8x384xf32>
    %32 = arith.negf %31 : vector<8x384xf32>
    %33 = math.exp %32 : vector<8x384xf32>
    %cst_10 = arith.constant 1.000000e+00 : f32
    %34 = vector.broadcast %cst_10 : f32 to vector<8x384xf32>
    %35 = arith.addf %34, %33 : vector<8x384xf32>
    %36 = arith.divf %34, %35 : vector<8x384xf32>
    %37 = vector.extract_strided_slice %36 {offsets = [0, 0], sizes = [8, 128], strides = [1, 1]} : vector<8x384xf32> to vector<8x128xf32>
    %38 = vector.extract_strided_slice %36 {offsets = [0, 128], sizes = [8, 128], strides = [1, 1]} : vector<8x384xf32> to vector<8x128xf32>
    %39 = vector.extract_strided_slice %36 {offsets = [0, 256], sizes = [8, 128], strides = [1, 1]} : vector<8x384xf32> to vector<8x128xf32>
    %40 = vector.extract_strided_slice %30 {offsets = [0, 384], sizes = [8, 128], strides = [1, 1]} : vector<8x512xf32> to vector<8x128xf32>
    %41 = math.tanh %40 : vector<8x128xf32>
    %42 = arith.mulf %38, %3 : vector<8x128xf32>
    %43 = arith.mulf %37, %41 : vector<8x128xf32>
    %44 = arith.addf %42, %43 : vector<8x128xf32>
    %45 = math.tanh %44 : vector<8x128xf32>
    %46 = arith.mulf %39, %45 : vector<8x128xf32>
    %c1_i32 = arith.constant 1 : i32
    %47 = arith.index_cast %c1_i32 : i32 to index
    %c0_11 = arith.constant 0 : index
    %c0_12 = arith.constant 0 : index
    %48 = vector.load %arg0[%47, %c0_11, %c0_12] : memref<8x8x512xf32, #tpu.memory_space<vmem>>, vector<1x8x512xf32>
    %49 = vector.shape_cast %48 : vector<1x8x512xf32> to vector<8x512xf32>
    %50 = arith.truncf %25 : vector<8x128xf32> to vector<8x128xbf16>
    %cst_13 = arith.constant dense<0.000000e+00> : vector<8x512xf32>
    %51 = tpu.matmul %50, %0, %cst_13 {dimension_numbers = #tpu.dot_dimension_numbers<[1], [0], [0], [1], [0, 0, 1, 1], [], []>} : vector<8x128xbf16>, vector<128x512xbf16>, vector<8x512xf32> -> vector<8x512xf32>
    %52 = arith.addf %49, %51 : vector<8x512xf32>
    %53 = vector.extract_strided_slice %52 {offsets = [0, 0], sizes = [8, 384], strides = [1, 1]} : vector<8x512xf32> to vector<8x384xf32>
    %54 = arith.negf %53 : vector<8x384xf32>
    %55 = math.exp %54 : vector<8x384xf32>
    %cst_14 = arith.constant 1.000000e+00 : f32
    %56 = vector.broadcast %cst_14 : f32 to vector<8x384xf32>
    %57 = arith.addf %56, %55 : vector<8x384xf32>
    %58 = arith.divf %56, %57 : vector<8x384xf32>
    %59 = vector.extract_strided_slice %58 {offsets = [0, 0], sizes = [8, 128], strides = [1, 1]} : vector<8x384xf32> to vector<8x128xf32>
    %60 = vector.extract_strided_slice %58 {offsets = [0, 128], sizes = [8, 128], strides = [1, 1]} : vector<8x384xf32> to vector<8x128xf32>
    %61 = vector.extract_strided_slice %58 {offsets = [0, 256], sizes = [8, 128], strides = [1, 1]} : vector<8x384xf32> to vector<8x128xf32>
    %62 = vector.extract_strided_slice %52 {offsets = [0, 384], sizes = [8, 128], strides = [1, 1]} : vector<8x512xf32> to vector<8x128xf32>
    %63 = math.tanh %62 : vector<8x128xf32>
    %64 = arith.mulf %60, %23 : vector<8x128xf32>
    %65 = arith.mulf %59, %63 : vector<8x128xf32>
    %66 = arith.addf %64, %65 : vector<8x128xf32>
    %67 = math.tanh %66 : vector<8x128xf32>
    %68 = arith.mulf %61, %67 : vector<8x128xf32>
    %69 = tpu.concatenate %68, %46 in 1 : vector<8x128xf32>, vector<8x128xf32> -> vector<8x256xf32>
    %70 = arith.truncf %69 : vector<8x256xf32> to vector<8x256xbf16>
    %cst_15 = arith.constant dense<0.000000e+00> : vector<8x512xf32>
    %71 = tpu.matmul %70, %1, %cst_15 {dimension_numbers = #tpu.dot_dimension_numbers<[1], [0], [0], [1], [0, 0, 1, 1], [], []>} : vector<8x256xbf16>, vector<256x512xbf16>, vector<8x512xf32> -> vector<8x512xf32>
    %72 = vector.broadcast %2 : vector<1x512xf32> to vector<8x512xf32>
    %73 = arith.addf %71, %72 : vector<8x512xf32>
    %74 = vector.extract_strided_slice %73 {offsets = [0, 0], sizes = [8, 384], strides = [1, 1]} : vector<8x512xf32> to vector<8x384xf32>
    %75 = arith.negf %74 : vector<8x384xf32>
    %76 = math.exp %75 : vector<8x384xf32>
    %cst_16 = arith.constant 1.000000e+00 : f32
    %77 = vector.broadcast %cst_16 : f32 to vector<8x384xf32>
    %78 = arith.addf %77, %76 : vector<8x384xf32>
    %79 = arith.divf %77, %78 : vector<8x384xf32>
    %80 = vector.extract_strided_slice %79 {offsets = [0, 0], sizes = [8, 128], strides = [1, 1]} : vector<8x384xf32> to vector<8x128xf32>
    %81 = vector.extract_strided_slice %79 {offsets = [0, 128], sizes = [8, 128], strides = [1, 1]} : vector<8x384xf32> to vector<8x128xf32>
    %82 = vector.extract_strided_slice %79 {offsets = [0, 256], sizes = [8, 128], strides = [1, 1]} : vector<8x384xf32> to vector<8x128xf32>
    %83 = vector.extract_strided_slice %73 {offsets = [0, 384], sizes = [8, 128], strides = [1, 1]} : vector<8x512xf32> to vector<8x128xf32>
    %84 = math.tanh %83 : vector<8x128xf32>
    %85 = arith.mulf %81, %44 : vector<8x128xf32>
    %86 = arith.mulf %80, %84 : vector<8x128xf32>
    %87 = arith.addf %85, %86 : vector<8x128xf32>
    %88 = math.tanh %87 : vector<8x128xf32>
    %89 = arith.mulf %82, %88 : vector<8x128xf32>
    %c2_i32 = arith.constant 2 : i32
    %90 = arith.index_cast %c2_i32 : i32 to index
    %c0_17 = arith.constant 0 : index
    %c0_18 = arith.constant 0 : index
    %91 = vector.load %arg0[%90, %c0_17, %c0_18] : memref<8x8x512xf32, #tpu.memory_space<vmem>>, vector<1x8x512xf32>
    %92 = vector.shape_cast %91 : vector<1x8x512xf32> to vector<8x512xf32>
    %93 = arith.truncf %68 : vector<8x128xf32> to vector<8x128xbf16>
    %cst_19 = arith.constant dense<0.000000e+00> : vector<8x512xf32>
    %94 = tpu.matmul %93, %0, %cst_19 {dimension_numbers = #tpu.dot_dimension_numbers<[1], [0], [0], [1], [0, 0, 1, 1], [], []>} : vector<8x128xbf16>, vector<128x512xbf16>, vector<8x512xf32> -> vector<8x512xf32>
    %95 = arith.addf %92, %94 : vector<8x512xf32>
    %96 = vector.extract_strided_slice %95 {offsets = [0, 0], sizes = [8, 384], strides = [1, 1]} : vector<8x512xf32> to vector<8x384xf32>
    %97 = arith.negf %96 : vector<8x384xf32>
    %98 = math.exp %97 : vector<8x384xf32>
    %cst_20 = arith.constant 1.000000e+00 : f32
    %99 = vector.broadcast %cst_20 : f32 to vector<8x384xf32>
    %100 = arith.addf %99, %98 : vector<8x384xf32>
    %101 = arith.divf %99, %100 : vector<8x384xf32>
    %102 = vector.extract_strided_slice %101 {offsets = [0, 0], sizes = [8, 128], strides = [1, 1]} : vector<8x384xf32> to vector<8x128xf32>
    %103 = vector.extract_strided_slice %101 {offsets = [0, 128], sizes = [8, 128], strides = [1, 1]} : vector<8x384xf32> to vector<8x128xf32>
    %104 = vector.extract_strided_slice %101 {offsets = [0, 256], sizes = [8, 128], strides = [1, 1]} : vector<8x384xf32> to vector<8x128xf32>
    %105 = vector.extract_strided_slice %95 {offsets = [0, 384], sizes = [8, 128], strides = [1, 1]} : vector<8x512xf32> to vector<8x128xf32>
    %106 = math.tanh %105 : vector<8x128xf32>
    %107 = arith.mulf %103, %66 : vector<8x128xf32>
    %108 = arith.mulf %102, %106 : vector<8x128xf32>
    %109 = arith.addf %107, %108 : vector<8x128xf32>
    %110 = math.tanh %109 : vector<8x128xf32>
    %111 = arith.mulf %104, %110 : vector<8x128xf32>
    %112 = tpu.concatenate %111, %89 in 1 : vector<8x128xf32>, vector<8x128xf32> -> vector<8x256xf32>
    %113 = arith.truncf %112 : vector<8x256xf32> to vector<8x256xbf16>
    %cst_21 = arith.constant dense<0.000000e+00> : vector<8x512xf32>
    %114 = tpu.matmul %113, %1, %cst_21 {dimension_numbers = #tpu.dot_dimension_numbers<[1], [0], [0], [1], [0, 0, 1, 1], [], []>} : vector<8x256xbf16>, vector<256x512xbf16>, vector<8x512xf32> -> vector<8x512xf32>
    %115 = vector.broadcast %2 : vector<1x512xf32> to vector<8x512xf32>
    %116 = arith.addf %114, %115 : vector<8x512xf32>
    %117 = vector.extract_strided_slice %116 {offsets = [0, 0], sizes = [8, 384], strides = [1, 1]} : vector<8x512xf32> to vector<8x384xf32>
    %118 = arith.negf %117 : vector<8x384xf32>
    %119 = math.exp %118 : vector<8x384xf32>
    %cst_22 = arith.constant 1.000000e+00 : f32
    %120 = vector.broadcast %cst_22 : f32 to vector<8x384xf32>
    %121 = arith.addf %120, %119 : vector<8x384xf32>
    %122 = arith.divf %120, %121 : vector<8x384xf32>
    %123 = vector.extract_strided_slice %122 {offsets = [0, 0], sizes = [8, 128], strides = [1, 1]} : vector<8x384xf32> to vector<8x128xf32>
    %124 = vector.extract_strided_slice %122 {offsets = [0, 128], sizes = [8, 128], strides = [1, 1]} : vector<8x384xf32> to vector<8x128xf32>
    %125 = vector.extract_strided_slice %122 {offsets = [0, 256], sizes = [8, 128], strides = [1, 1]} : vector<8x384xf32> to vector<8x128xf32>
    %126 = vector.extract_strided_slice %116 {offsets = [0, 384], sizes = [8, 128], strides = [1, 1]} : vector<8x512xf32> to vector<8x128xf32>
    %127 = math.tanh %126 : vector<8x128xf32>
    %128 = arith.mulf %124, %87 : vector<8x128xf32>
    %129 = arith.mulf %123, %127 : vector<8x128xf32>
    %130 = arith.addf %128, %129 : vector<8x128xf32>
    %131 = math.tanh %130 : vector<8x128xf32>
    %132 = arith.mulf %125, %131 : vector<8x128xf32>
    %c3_i32 = arith.constant 3 : i32
    %133 = arith.index_cast %c3_i32 : i32 to index
    %c0_23 = arith.constant 0 : index
    %c0_24 = arith.constant 0 : index
    %134 = vector.load %arg0[%133, %c0_23, %c0_24] : memref<8x8x512xf32, #tpu.memory_space<vmem>>, vector<1x8x512xf32>
    %135 = vector.shape_cast %134 : vector<1x8x512xf32> to vector<8x512xf32>
    %136 = arith.truncf %111 : vector<8x128xf32> to vector<8x128xbf16>
    %cst_25 = arith.constant dense<0.000000e+00> : vector<8x512xf32>
    %137 = tpu.matmul %136, %0, %cst_25 {dimension_numbers = #tpu.dot_dimension_numbers<[1], [0], [0], [1], [0, 0, 1, 1], [], []>} : vector<8x128xbf16>, vector<128x512xbf16>, vector<8x512xf32> -> vector<8x512xf32>
    %138 = arith.addf %135, %137 : vector<8x512xf32>
    %139 = vector.extract_strided_slice %138 {offsets = [0, 0], sizes = [8, 384], strides = [1, 1]} : vector<8x512xf32> to vector<8x384xf32>
    %140 = arith.negf %139 : vector<8x384xf32>
    %141 = math.exp %140 : vector<8x384xf32>
    %cst_26 = arith.constant 1.000000e+00 : f32
    %142 = vector.broadcast %cst_26 : f32 to vector<8x384xf32>
    %143 = arith.addf %142, %141 : vector<8x384xf32>
    %144 = arith.divf %142, %143 : vector<8x384xf32>
    %145 = vector.extract_strided_slice %144 {offsets = [0, 0], sizes = [8, 128], strides = [1, 1]} : vector<8x384xf32> to vector<8x128xf32>
    %146 = vector.extract_strided_slice %144 {offsets = [0, 128], sizes = [8, 128], strides = [1, 1]} : vector<8x384xf32> to vector<8x128xf32>
    %147 = vector.extract_strided_slice %144 {offsets = [0, 256], sizes = [8, 128], strides = [1, 1]} : vector<8x384xf32> to vector<8x128xf32>
    %148 = vector.extract_strided_slice %138 {offsets = [0, 384], sizes = [8, 128], strides = [1, 1]} : vector<8x512xf32> to vector<8x128xf32>
    %149 = math.tanh %148 : vector<8x128xf32>
    %150 = arith.mulf %146, %109 : vector<8x128xf32>
    %151 = arith.mulf %145, %149 : vector<8x128xf32>
    %152 = arith.addf %150, %151 : vector<8x128xf32>
    %153 = math.tanh %152 : vector<8x128xf32>
    %154 = arith.mulf %147, %153 : vector<8x128xf32>
    %155 = tpu.concatenate %154, %132 in 1 : vector<8x128xf32>, vector<8x128xf32> -> vector<8x256xf32>
    %156 = arith.truncf %155 : vector<8x256xf32> to vector<8x256xbf16>
    %cst_27 = arith.constant dense<0.000000e+00> : vector<8x512xf32>
    %157 = tpu.matmul %156, %1, %cst_27 {dimension_numbers = #tpu.dot_dimension_numbers<[1], [0], [0], [1], [0, 0, 1, 1], [], []>} : vector<8x256xbf16>, vector<256x512xbf16>, vector<8x512xf32> -> vector<8x512xf32>
    %158 = vector.broadcast %2 : vector<1x512xf32> to vector<8x512xf32>
    %159 = arith.addf %157, %158 : vector<8x512xf32>
    %160 = vector.extract_strided_slice %159 {offsets = [0, 0], sizes = [8, 384], strides = [1, 1]} : vector<8x512xf32> to vector<8x384xf32>
    %161 = arith.negf %160 : vector<8x384xf32>
    %162 = math.exp %161 : vector<8x384xf32>
    %cst_28 = arith.constant 1.000000e+00 : f32
    %163 = vector.broadcast %cst_28 : f32 to vector<8x384xf32>
    %164 = arith.addf %163, %162 : vector<8x384xf32>
    %165 = arith.divf %163, %164 : vector<8x384xf32>
    %166 = vector.extract_strided_slice %165 {offsets = [0, 0], sizes = [8, 128], strides = [1, 1]} : vector<8x384xf32> to vector<8x128xf32>
    %167 = vector.extract_strided_slice %165 {offsets = [0, 128], sizes = [8, 128], strides = [1, 1]} : vector<8x384xf32> to vector<8x128xf32>
    %168 = vector.extract_strided_slice %165 {offsets = [0, 256], sizes = [8, 128], strides = [1, 1]} : vector<8x384xf32> to vector<8x128xf32>
    %169 = vector.extract_strided_slice %159 {offsets = [0, 384], sizes = [8, 128], strides = [1, 1]} : vector<8x512xf32> to vector<8x128xf32>
    %170 = math.tanh %169 : vector<8x128xf32>
    %171 = arith.mulf %167, %130 : vector<8x128xf32>
    %172 = arith.mulf %166, %170 : vector<8x128xf32>
    %173 = arith.addf %171, %172 : vector<8x128xf32>
    %174 = math.tanh %173 : vector<8x128xf32>
    %175 = arith.mulf %168, %174 : vector<8x128xf32>
    %c4_i32 = arith.constant 4 : i32
    %176 = arith.index_cast %c4_i32 : i32 to index
    %c0_29 = arith.constant 0 : index
    %c0_30 = arith.constant 0 : index
    %177 = vector.load %arg0[%176, %c0_29, %c0_30] : memref<8x8x512xf32, #tpu.memory_space<vmem>>, vector<1x8x512xf32>
    %178 = vector.shape_cast %177 : vector<1x8x512xf32> to vector<8x512xf32>
    %179 = arith.truncf %154 : vector<8x128xf32> to vector<8x128xbf16>
    %cst_31 = arith.constant dense<0.000000e+00> : vector<8x512xf32>
    %180 = tpu.matmul %179, %0, %cst_31 {dimension_numbers = #tpu.dot_dimension_numbers<[1], [0], [0], [1], [0, 0, 1, 1], [], []>} : vector<8x128xbf16>, vector<128x512xbf16>, vector<8x512xf32> -> vector<8x512xf32>
    %181 = arith.addf %178, %180 : vector<8x512xf32>
    %182 = vector.extract_strided_slice %181 {offsets = [0, 0], sizes = [8, 384], strides = [1, 1]} : vector<8x512xf32> to vector<8x384xf32>
    %183 = arith.negf %182 : vector<8x384xf32>
    %184 = math.exp %183 : vector<8x384xf32>
    %cst_32 = arith.constant 1.000000e+00 : f32
    %185 = vector.broadcast %cst_32 : f32 to vector<8x384xf32>
    %186 = arith.addf %185, %184 : vector<8x384xf32>
    %187 = arith.divf %185, %186 : vector<8x384xf32>
    %188 = vector.extract_strided_slice %187 {offsets = [0, 0], sizes = [8, 128], strides = [1, 1]} : vector<8x384xf32> to vector<8x128xf32>
    %189 = vector.extract_strided_slice %187 {offsets = [0, 128], sizes = [8, 128], strides = [1, 1]} : vector<8x384xf32> to vector<8x128xf32>
    %190 = vector.extract_strided_slice %187 {offsets = [0, 256], sizes = [8, 128], strides = [1, 1]} : vector<8x384xf32> to vector<8x128xf32>
    %191 = vector.extract_strided_slice %181 {offsets = [0, 384], sizes = [8, 128], strides = [1, 1]} : vector<8x512xf32> to vector<8x128xf32>
    %192 = math.tanh %191 : vector<8x128xf32>
    %193 = arith.mulf %189, %152 : vector<8x128xf32>
    %194 = arith.mulf %188, %192 : vector<8x128xf32>
    %195 = arith.addf %193, %194 : vector<8x128xf32>
    %196 = math.tanh %195 : vector<8x128xf32>
    %197 = arith.mulf %190, %196 : vector<8x128xf32>
    %198 = tpu.concatenate %197, %175 in 1 : vector<8x128xf32>, vector<8x128xf32> -> vector<8x256xf32>
    %199 = arith.truncf %198 : vector<8x256xf32> to vector<8x256xbf16>
    %cst_33 = arith.constant dense<0.000000e+00> : vector<8x512xf32>
    %200 = tpu.matmul %199, %1, %cst_33 {dimension_numbers = #tpu.dot_dimension_numbers<[1], [0], [0], [1], [0, 0, 1, 1], [], []>} : vector<8x256xbf16>, vector<256x512xbf16>, vector<8x512xf32> -> vector<8x512xf32>
    %201 = vector.broadcast %2 : vector<1x512xf32> to vector<8x512xf32>
    %202 = arith.addf %200, %201 : vector<8x512xf32>
    %203 = vector.extract_strided_slice %202 {offsets = [0, 0], sizes = [8, 384], strides = [1, 1]} : vector<8x512xf32> to vector<8x384xf32>
    %204 = arith.negf %203 : vector<8x384xf32>
    %205 = math.exp %204 : vector<8x384xf32>
    %cst_34 = arith.constant 1.000000e+00 : f32
    %206 = vector.broadcast %cst_34 : f32 to vector<8x384xf32>
    %207 = arith.addf %206, %205 : vector<8x384xf32>
    %208 = arith.divf %206, %207 : vector<8x384xf32>
    %209 = vector.extract_strided_slice %208 {offsets = [0, 0], sizes = [8, 128], strides = [1, 1]} : vector<8x384xf32> to vector<8x128xf32>
    %210 = vector.extract_strided_slice %208 {offsets = [0, 128], sizes = [8, 128], strides = [1, 1]} : vector<8x384xf32> to vector<8x128xf32>
    %211 = vector.extract_strided_slice %208 {offsets = [0, 256], sizes = [8, 128], strides = [1, 1]} : vector<8x384xf32> to vector<8x128xf32>
    %212 = vector.extract_strided_slice %202 {offsets = [0, 384], sizes = [8, 128], strides = [1, 1]} : vector<8x512xf32> to vector<8x128xf32>
    %213 = math.tanh %212 : vector<8x128xf32>
    %214 = arith.mulf %210, %173 : vector<8x128xf32>
    %215 = arith.mulf %209, %213 : vector<8x128xf32>
    %216 = arith.addf %214, %215 : vector<8x128xf32>
    %217 = math.tanh %216 : vector<8x128xf32>
    %218 = arith.mulf %211, %217 : vector<8x128xf32>
    %c5_i32 = arith.constant 5 : i32
    %219 = arith.index_cast %c5_i32 : i32 to index
    %c0_35 = arith.constant 0 : index
    %c0_36 = arith.constant 0 : index
    %220 = vector.load %arg0[%219, %c0_35, %c0_36] : memref<8x8x512xf32, #tpu.memory_space<vmem>>, vector<1x8x512xf32>
    %221 = vector.shape_cast %220 : vector<1x8x512xf32> to vector<8x512xf32>
    %222 = arith.truncf %197 : vector<8x128xf32> to vector<8x128xbf16>
    %cst_37 = arith.constant dense<0.000000e+00> : vector<8x512xf32>
    %223 = tpu.matmul %222, %0, %cst_37 {dimension_numbers = #tpu.dot_dimension_numbers<[1], [0], [0], [1], [0, 0, 1, 1], [], []>} : vector<8x128xbf16>, vector<128x512xbf16>, vector<8x512xf32> -> vector<8x512xf32>
    %224 = arith.addf %221, %223 : vector<8x512xf32>
    %225 = vector.extract_strided_slice %224 {offsets = [0, 0], sizes = [8, 384], strides = [1, 1]} : vector<8x512xf32> to vector<8x384xf32>
    %226 = arith.negf %225 : vector<8x384xf32>
    %227 = math.exp %226 : vector<8x384xf32>
    %cst_38 = arith.constant 1.000000e+00 : f32
    %228 = vector.broadcast %cst_38 : f32 to vector<8x384xf32>
    %229 = arith.addf %228, %227 : vector<8x384xf32>
    %230 = arith.divf %228, %229 : vector<8x384xf32>
    %231 = vector.extract_strided_slice %230 {offsets = [0, 0], sizes = [8, 128], strides = [1, 1]} : vector<8x384xf32> to vector<8x128xf32>
    %232 = vector.extract_strided_slice %230 {offsets = [0, 128], sizes = [8, 128], strides = [1, 1]} : vector<8x384xf32> to vector<8x128xf32>
    %233 = vector.extract_strided_slice %230 {offsets = [0, 256], sizes = [8, 128], strides = [1, 1]} : vector<8x384xf32> to vector<8x128xf32>
    %234 = vector.extract_strided_slice %224 {offsets = [0, 384], sizes = [8, 128], strides = [1, 1]} : vector<8x512xf32> to vector<8x128xf32>
    %235 = math.tanh %234 : vector<8x128xf32>
    %236 = arith.mulf %232, %195 : vector<8x128xf32>
    %237 = arith.mulf %231, %235 : vector<8x128xf32>
    %238 = arith.addf %236, %237 : vector<8x128xf32>
    %239 = math.tanh %238 : vector<8x128xf32>
    %240 = arith.mulf %233, %239 : vector<8x128xf32>
    %241 = tpu.concatenate %240, %218 in 1 : vector<8x128xf32>, vector<8x128xf32> -> vector<8x256xf32>
    %242 = arith.truncf %241 : vector<8x256xf32> to vector<8x256xbf16>
    %cst_39 = arith.constant dense<0.000000e+00> : vector<8x512xf32>
    %243 = tpu.matmul %242, %1, %cst_39 {dimension_numbers = #tpu.dot_dimension_numbers<[1], [0], [0], [1], [0, 0, 1, 1], [], []>} : vector<8x256xbf16>, vector<256x512xbf16>, vector<8x512xf32> -> vector<8x512xf32>
    %244 = vector.broadcast %2 : vector<1x512xf32> to vector<8x512xf32>
    %245 = arith.addf %243, %244 : vector<8x512xf32>
    %246 = vector.extract_strided_slice %245 {offsets = [0, 0], sizes = [8, 384], strides = [1, 1]} : vector<8x512xf32> to vector<8x384xf32>
    %247 = arith.negf %246 : vector<8x384xf32>
    %248 = math.exp %247 : vector<8x384xf32>
    %cst_40 = arith.constant 1.000000e+00 : f32
    %249 = vector.broadcast %cst_40 : f32 to vector<8x384xf32>
    %250 = arith.addf %249, %248 : vector<8x384xf32>
    %251 = arith.divf %249, %250 : vector<8x384xf32>
    %252 = vector.extract_strided_slice %251 {offsets = [0, 0], sizes = [8, 128], strides = [1, 1]} : vector<8x384xf32> to vector<8x128xf32>
    %253 = vector.extract_strided_slice %251 {offsets = [0, 128], sizes = [8, 128], strides = [1, 1]} : vector<8x384xf32> to vector<8x128xf32>
    %254 = vector.extract_strided_slice %251 {offsets = [0, 256], sizes = [8, 128], strides = [1, 1]} : vector<8x384xf32> to vector<8x128xf32>
    %255 = vector.extract_strided_slice %245 {offsets = [0, 384], sizes = [8, 128], strides = [1, 1]} : vector<8x512xf32> to vector<8x128xf32>
    %256 = math.tanh %255 : vector<8x128xf32>
    %257 = arith.mulf %253, %216 : vector<8x128xf32>
    %258 = arith.mulf %252, %256 : vector<8x128xf32>
    %259 = arith.addf %257, %258 : vector<8x128xf32>
    %260 = math.tanh %259 : vector<8x128xf32>
    %261 = arith.mulf %254, %260 : vector<8x128xf32>
    %c6_i32 = arith.constant 6 : i32
    %262 = arith.index_cast %c6_i32 : i32 to index
    %c0_41 = arith.constant 0 : index
    %c0_42 = arith.constant 0 : index
    %263 = vector.load %arg0[%262, %c0_41, %c0_42] : memref<8x8x512xf32, #tpu.memory_space<vmem>>, vector<1x8x512xf32>
    %264 = vector.shape_cast %263 : vector<1x8x512xf32> to vector<8x512xf32>
    %265 = arith.truncf %240 : vector<8x128xf32> to vector<8x128xbf16>
    %cst_43 = arith.constant dense<0.000000e+00> : vector<8x512xf32>
    %266 = tpu.matmul %265, %0, %cst_43 {dimension_numbers = #tpu.dot_dimension_numbers<[1], [0], [0], [1], [0, 0, 1, 1], [], []>} : vector<8x128xbf16>, vector<128x512xbf16>, vector<8x512xf32> -> vector<8x512xf32>
    %267 = arith.addf %264, %266 : vector<8x512xf32>
    %268 = vector.extract_strided_slice %267 {offsets = [0, 0], sizes = [8, 384], strides = [1, 1]} : vector<8x512xf32> to vector<8x384xf32>
    %269 = arith.negf %268 : vector<8x384xf32>
    %270 = math.exp %269 : vector<8x384xf32>
    %cst_44 = arith.constant 1.000000e+00 : f32
    %271 = vector.broadcast %cst_44 : f32 to vector<8x384xf32>
    %272 = arith.addf %271, %270 : vector<8x384xf32>
    %273 = arith.divf %271, %272 : vector<8x384xf32>
    %274 = vector.extract_strided_slice %273 {offsets = [0, 0], sizes = [8, 128], strides = [1, 1]} : vector<8x384xf32> to vector<8x128xf32>
    %275 = vector.extract_strided_slice %273 {offsets = [0, 128], sizes = [8, 128], strides = [1, 1]} : vector<8x384xf32> to vector<8x128xf32>
    %276 = vector.extract_strided_slice %273 {offsets = [0, 256], sizes = [8, 128], strides = [1, 1]} : vector<8x384xf32> to vector<8x128xf32>
    %277 = vector.extract_strided_slice %267 {offsets = [0, 384], sizes = [8, 128], strides = [1, 1]} : vector<8x512xf32> to vector<8x128xf32>
    %278 = math.tanh %277 : vector<8x128xf32>
    %279 = arith.mulf %275, %238 : vector<8x128xf32>
    %280 = arith.mulf %274, %278 : vector<8x128xf32>
    %281 = arith.addf %279, %280 : vector<8x128xf32>
    %282 = math.tanh %281 : vector<8x128xf32>
    %283 = arith.mulf %276, %282 : vector<8x128xf32>
    %284 = tpu.concatenate %283, %261 in 1 : vector<8x128xf32>, vector<8x128xf32> -> vector<8x256xf32>
    %285 = arith.truncf %284 : vector<8x256xf32> to vector<8x256xbf16>
    %cst_45 = arith.constant dense<0.000000e+00> : vector<8x512xf32>
    %286 = tpu.matmul %285, %1, %cst_45 {dimension_numbers = #tpu.dot_dimension_numbers<[1], [0], [0], [1], [0, 0, 1, 1], [], []>} : vector<8x256xbf16>, vector<256x512xbf16>, vector<8x512xf32> -> vector<8x512xf32>
    %287 = vector.broadcast %2 : vector<1x512xf32> to vector<8x512xf32>
    %288 = arith.addf %286, %287 : vector<8x512xf32>
    %289 = vector.extract_strided_slice %288 {offsets = [0, 0], sizes = [8, 384], strides = [1, 1]} : vector<8x512xf32> to vector<8x384xf32>
    %290 = arith.negf %289 : vector<8x384xf32>
    %291 = math.exp %290 : vector<8x384xf32>
    %cst_46 = arith.constant 1.000000e+00 : f32
    %292 = vector.broadcast %cst_46 : f32 to vector<8x384xf32>
    %293 = arith.addf %292, %291 : vector<8x384xf32>
    %294 = arith.divf %292, %293 : vector<8x384xf32>
    %295 = vector.extract_strided_slice %294 {offsets = [0, 0], sizes = [8, 128], strides = [1, 1]} : vector<8x384xf32> to vector<8x128xf32>
    %296 = vector.extract_strided_slice %294 {offsets = [0, 128], sizes = [8, 128], strides = [1, 1]} : vector<8x384xf32> to vector<8x128xf32>
    %297 = vector.extract_strided_slice %294 {offsets = [0, 256], sizes = [8, 128], strides = [1, 1]} : vector<8x384xf32> to vector<8x128xf32>
    %298 = vector.extract_strided_slice %288 {offsets = [0, 384], sizes = [8, 128], strides = [1, 1]} : vector<8x512xf32> to vector<8x128xf32>
    %299 = math.tanh %298 : vector<8x128xf32>
    %300 = arith.mulf %296, %259 : vector<8x128xf32>
    %301 = arith.mulf %295, %299 : vector<8x128xf32>
    %302 = arith.addf %300, %301 : vector<8x128xf32>
    %303 = math.tanh %302 : vector<8x128xf32>
    %304 = arith.mulf %297, %303 : vector<8x128xf32>
    %c7_i32 = arith.constant 7 : i32
    %305 = arith.index_cast %c7_i32 : i32 to index
    %c0_47 = arith.constant 0 : index
    %c0_48 = arith.constant 0 : index
    %306 = vector.load %arg0[%305, %c0_47, %c0_48] : memref<8x8x512xf32, #tpu.memory_space<vmem>>, vector<1x8x512xf32>
    %307 = vector.shape_cast %306 : vector<1x8x512xf32> to vector<8x512xf32>
    %308 = arith.truncf %283 : vector<8x128xf32> to vector<8x128xbf16>
    %cst_49 = arith.constant dense<0.000000e+00> : vector<8x512xf32>
    %309 = tpu.matmul %308, %0, %cst_49 {dimension_numbers = #tpu.dot_dimension_numbers<[1], [0], [0], [1], [0, 0, 1, 1], [], []>} : vector<8x128xbf16>, vector<128x512xbf16>, vector<8x512xf32> -> vector<8x512xf32>
    %310 = arith.addf %307, %309 : vector<8x512xf32>
    %311 = vector.extract_strided_slice %310 {offsets = [0, 0], sizes = [8, 384], strides = [1, 1]} : vector<8x512xf32> to vector<8x384xf32>
    %312 = arith.negf %311 : vector<8x384xf32>
    %313 = math.exp %312 : vector<8x384xf32>
    %cst_50 = arith.constant 1.000000e+00 : f32
    %314 = vector.broadcast %cst_50 : f32 to vector<8x384xf32>
    %315 = arith.addf %314, %313 : vector<8x384xf32>
    %316 = arith.divf %314, %315 : vector<8x384xf32>
    %317 = vector.extract_strided_slice %316 {offsets = [0, 0], sizes = [8, 128], strides = [1, 1]} : vector<8x384xf32> to vector<8x128xf32>
    %318 = vector.extract_strided_slice %316 {offsets = [0, 128], sizes = [8, 128], strides = [1, 1]} : vector<8x384xf32> to vector<8x128xf32>
    %319 = vector.extract_strided_slice %316 {offsets = [0, 256], sizes = [8, 128], strides = [1, 1]} : vector<8x384xf32> to vector<8x128xf32>
    %320 = vector.extract_strided_slice %310 {offsets = [0, 384], sizes = [8, 128], strides = [1, 1]} : vector<8x512xf32> to vector<8x128xf32>
    %321 = math.tanh %320 : vector<8x128xf32>
    %322 = arith.mulf %318, %281 : vector<8x128xf32>
    %323 = arith.mulf %317, %321 : vector<8x128xf32>
    %324 = arith.addf %322, %323 : vector<8x128xf32>
    %325 = math.tanh %324 : vector<8x128xf32>
    %326 = arith.mulf %319, %325 : vector<8x128xf32>
    %327 = tpu.concatenate %326, %304 in 1 : vector<8x128xf32>, vector<8x128xf32> -> vector<8x256xf32>
    %328 = arith.truncf %327 : vector<8x256xf32> to vector<8x256xbf16>
    %cst_51 = arith.constant dense<0.000000e+00> : vector<8x512xf32>
    %329 = tpu.matmul %328, %1, %cst_51 {dimension_numbers = #tpu.dot_dimension_numbers<[1], [0], [0], [1], [0, 0, 1, 1], [], []>} : vector<8x256xbf16>, vector<256x512xbf16>, vector<8x512xf32> -> vector<8x512xf32>
    %330 = vector.broadcast %2 : vector<1x512xf32> to vector<8x512xf32>
    %331 = arith.addf %329, %330 : vector<8x512xf32>
    %332 = vector.extract_strided_slice %331 {offsets = [0, 0], sizes = [8, 384], strides = [1, 1]} : vector<8x512xf32> to vector<8x384xf32>
    %333 = arith.negf %332 : vector<8x384xf32>
    %334 = math.exp %333 : vector<8x384xf32>
    %cst_52 = arith.constant 1.000000e+00 : f32
    %335 = vector.broadcast %cst_52 : f32 to vector<8x384xf32>
    %336 = arith.addf %335, %334 : vector<8x384xf32>
    %337 = arith.divf %335, %336 : vector<8x384xf32>
    %338 = vector.extract_strided_slice %337 {offsets = [0, 0], sizes = [8, 128], strides = [1, 1]} : vector<8x384xf32> to vector<8x128xf32>
    %339 = vector.extract_strided_slice %337 {offsets = [0, 128], sizes = [8, 128], strides = [1, 1]} : vector<8x384xf32> to vector<8x128xf32>
    %340 = vector.extract_strided_slice %337 {offsets = [0, 256], sizes = [8, 128], strides = [1, 1]} : vector<8x384xf32> to vector<8x128xf32>
    %341 = vector.extract_strided_slice %331 {offsets = [0, 384], sizes = [8, 128], strides = [1, 1]} : vector<8x512xf32> to vector<8x128xf32>
    %342 = math.tanh %341 : vector<8x128xf32>
    %343 = arith.mulf %339, %302 : vector<8x128xf32>
    %344 = arith.mulf %338, %342 : vector<8x128xf32>
    %345 = arith.addf %343, %344 : vector<8x128xf32>
    %346 = math.tanh %345 : vector<8x128xf32>
    %347 = arith.mulf %340, %346 : vector<8x128xf32>
    %c8_i32 = arith.constant 8 : i32
    %348 = arith.truncf %347 : vector<8x128xf32> to vector<8x128xbf16>
    %c0_53 = arith.constant 0 : index
    %c0_54 = arith.constant 0 : index
    %349 = vector.load %arg4[%c0_53, %c0_54] : memref<128x128xbf16, #tpu.memory_space<vmem>>, vector<128x128xbf16>
    %cst_55 = arith.constant dense<0.000000e+00> : vector<8x128xf32>
    %350 = tpu.matmul %348, %349, %cst_55 {dimension_numbers = #tpu.dot_dimension_numbers<[1], [0], [0], [1], [0, 0, 1, 1], [], []>} : vector<8x128xbf16>, vector<128x128xbf16>, vector<8x128xf32> -> vector<8x128xf32>
    %c0_56 = arith.constant 0 : index
    %c0_57 = arith.constant 0 : index
    %351 = vector.load %arg5[%c0_56, %c0_57] : memref<1x128xf32, #tpu.memory_space<vmem>>, vector<1x128xf32>
    %352 = vector.broadcast %351 : vector<1x128xf32> to vector<8x128xf32>
    %353 = arith.addf %350, %352 : vector<8x128xf32>
    %c0_58 = arith.constant 0 : index
    %c0_59 = arith.constant 0 : index
    %354 = vector.load %arg6[%c0_58, %c0_59] : memref<8x128xf32, #tpu.memory_space<vmem>>, vector<8x128xf32>
    tpu.vector_store %arg6[%c0_58, %c0_59], %353 {strides = array<i32>} : memref<8x128xf32, #tpu.memory_space<vmem>>, vector<8x128xf32>,
    return
  }
}

</mosaic_0001>

<llo_original>
// kernel: model_forward.1
$region0: #{model_forward.1}
  #allocation0 [shape = 'u32[]', space=smem, size = 0x4, offset = 0x4, fixed_abs, tag = 'smem constant byte address 0x4 - core index']
  #allocation1 [shape = 'u32[144,128]{1,0:T(1,128)}', space=vmem, size = 0x12000, scoped, tag = 'internal scratch']
  %s0 = inlined_call_operand.vmem [shape: f32[8,8,512], index: 0, kind: input, shape index: {}]
  %s1 = inlined_call_operand.vmem [shape: bf16[128,512], index: 1, kind: input, shape index: {}]
  %s2 = inlined_call_operand.vmem [shape: bf16[256,512], index: 2, kind: input, shape index: {}]
  %s3 = inlined_call_operand.vmem [shape: f32[1,512], index: 3, kind: input, shape index: {}]
  %s4 = inlined_call_operand.vmem [shape: bf16[128,128], index: 4, kind: input, shape index: {}]
  %s5 = inlined_call_operand.vmem [shape: f32[1,128], index: 5, kind: input, shape index: {}]
  %s6 = inlined_call_operand.hbm [shape: f32[8,128], index: 6, kind: output, shape index: {}]
  %s7 = sld [smem:[#allocation0]]
  $region34: #{model_forward.1} parent=0
    _
  %s9 = ssub.s32 1, %s7
  %s10 = scalar_select 0, %s9, %s7
  $region1: #{model_forward.1} parent=0
    #allocation2 [shape = 'u8[4096]{0}', space=vmem, size = 0x1000, scoped, tag = 'output window, operand 0, single buffered']
    #allocation3 [shape = 's32[1]{0}', space=sflag, size = 0x4, scoped, tag = 'scoped memory for model_forward.1']
    %11 = vsyncpa [#allocation3], 0
    // Predicated region
    $region2: #{model_forward.1} parent=1 // pred_check
      _
    $region3: #{model_forward.1} parent=1 // pred_check_branch
      %13 = sbr.rel (0) target = $region5
    $region4: #{model_forward.1} parent=1 // pred_region
      _
    $region5: #{model_forward.1} parent=1 // pred_fallthru
      _
    // Predicated region
    $region6: #{model_forward.1} parent=1 // pred_check
      _
    $region7: #{model_forward.1} parent=1 // pred_check_branch
      %15 = sbr.rel (0) target = $region9
    $region8: #{model_forward.1} parent=1 // pred_region
      _
    $region9: #{model_forward.1} parent=1 // pred_fallthru
      _
    // Predicated region
    $region10: #{model_forward.1} parent=1 // pred_check
      _
    $region11: #{model_forward.1} parent=1 // pred_check_branch
      %17 = sbr.rel (0) target = $region13
    $region12: #{model_forward.1} parent=1 // pred_region
      _
    $region13: #{model_forward.1} parent=1 // pred_fallthru
      _
    // Predicated region
    $region14: #{model_forward.1} parent=1 // pred_check
      _
    $region15: #{model_forward.1} parent=1 // pred_check_branch
      %19 = sbr.rel (0) target = $region17
    $region16: #{model_forward.1} parent=1 // pred_region
      _
    $region17: #{model_forward.1} parent=1 // pred_fallthru
      _
    // Predicated region
    $region18: #{model_forward.1} parent=1 // pred_check
      _
    $region19: #{model_forward.1} parent=1 // pred_check_branch
      %21 = sbr.rel (0) target = $region21
    $region20: #{model_forward.1} parent=1 // pred_region
      _
    $region21: #{model_forward.1} parent=1 // pred_fallthru
      _
    // Predicated region
    $region22: #{model_forward.1} parent=1 // pred_check
      _
    $region23: #{model_forward.1} parent=1 // pred_check_branch
      %23 = sbr.rel (0) target = $region25
    $region24: #{model_forward.1} parent=1 // pred_region
      _
    $region25: #{model_forward.1} parent=1 // pred_fallthru
      _
    %v25 = vld [vmem:[%s1] sm:$0xff]
    %v26 = vld [vmem:[%s1 + $0x8] sm:$0xff]
    %v27 = vld [vmem:[%s1 + $0x10] sm:$0xff]
    %v28 = vld [vmem:[%s1 + $0x18] sm:$0xff]
    %v29 = vld [vmem:[%s1 + $0x20] sm:$0xff]
    %v30 = vld [vmem:[%s1 + $0x28] sm:$0xff]
    %v31 = vld [vmem:[%s1 + $0x30] sm:$0xff]
    %v32 = vld [vmem:[%s1 + $0x38] sm:$0xff]
    %v33 = vld [vmem:[%s1 + $0x40] sm:$0xff]
    %v34 = vld [vmem:[%s1 + $0x48] sm:$0xff]
    %v35 = vld [vmem:[%s1 + $0x50] sm:$0xff]
    %v36 = vld [vmem:[%s1 + $0x58] sm:$0xff]
    %v37 = vld [vmem:[%s1 + $0x60] sm:$0xff]
    %v38 = vld [vmem:[%s1 + $0x68] sm:$0xff]
    %v39 = vld [vmem:[%s1 + $0x70] sm:$0xff]
    %v40 = vld [vmem:[%s1 + $0x78] sm:$0xff]
    %v41 = vld [vmem:[%s1 + $0x80] sm:$0xff]
    %v42 = vld [vmem:[%s1 + $0x88] sm:$0xff]
    %v43 = vld [vmem:[%s1 + $0x90] sm:$0xff]
    %v44 = vld [vmem:[%s1 + $0x98] sm:$0xff]
    %v45 = vld [vmem:[%s1 + $0xa0] sm:$0xff]
    %v46 = vld [vmem:[%s1 + $0xa8] sm:$0xff]
    %v47 = vld [vmem:[%s1 + $0xb0] sm:$0xff]
    %v48 = vld [vmem:[%s1 + $0xb8] sm:$0xff]
    %v49 = vld [vmem:[%s1 + $0xc0] sm:$0xff]
    %v50 = vld [vmem:[%s1 + $0xc8] sm:$0xff]
    %v51 = vld [vmem:[%s1 + $0xd0] sm:$0xff]
    %v52 = vld [vmem:[%s1 + $0xd8] sm:$0xff]
    %v53 = vld [vmem:[%s1 + $0xe0] sm:$0xff]
    %v54 = vld [vmem:[%s1 + $0xe8] sm:$0xff]
    %v55 = vld [vmem:[%s1 + $0xf0] sm:$0xff]
    %v56 = vld [vmem:[%s1 + $0xf8] sm:$0xff]
    %v57 = vld [vmem:[%s2] sm:$0xff]
    %v58 = vld [vmem:[%s2 + $0x8] sm:$0xff]
    %v59 = vld [vmem:[%s2 + $0x10] sm:$0xff]
    %v60 = vld [vmem:[%s2 + $0x18] sm:$0xff]
    %v61 = vld [vmem:[%s2 + $0x20] sm:$0xff]
    %v62 = vld [vmem:[%s2 + $0x28] sm:$0xff]
    %v63 = vld [vmem:[%s2 + $0x30] sm:$0xff]
    %v64 = vld [vmem:[%s2 + $0x38] sm:$0xff]
    %v65 = vld [vmem:[%s2 + $0x40] sm:$0xff]
    %v66 = vld [vmem:[%s2 + $0x48] sm:$0xff]
    %v67 = vld [vmem:[%s2 + $0x50] sm:$0xff]
    %v68 = vld [vmem:[%s2 + $0x58] sm:$0xff]
    %v69 = vld [vmem:[%s2 + $0x60] sm:$0xff]
    %v70 = vld [vmem:[%s2 + $0x68] sm:$0xff]
    %v71 = vld [vmem:[%s2 + $0x70] sm:$0xff]
    %v72 = vld [vmem:[%s2 + $0x78] sm:$0xff]
    %v73 = vld [vmem:[%s2 + $0x80] sm:$0xff]
    %v74 = vld [vmem:[%s2 + $0x88] sm:$0xff]
    %v75 = vld [vmem:[%s2 + $0x90] sm:$0xff]
    %v76 = vld [vmem:[%s2 + $0x98] sm:$0xff]
    %v77 = vld [vmem:[%s2 + $0xa0] sm:$0xff]
    %v78 = vld [vmem:[%s2 + $0xa8] sm:$0xff]
    %v79 = vld [vmem:[%s2 + $0xb0] sm:$0xff]
    %v80 = vld [vmem:[%s2 + $0xb8] sm:$0xff]
    %v81 = vld [vmem:[%s2 + $0xc0] sm:$0xff]
    %v82 = vld [vmem:[%s2 + $0xc8] sm:$0xff]
    %v83 = vld [vmem:[%s2 + $0xd0] sm:$0xff]
    %v84 = vld [vmem:[%s2 + $0xd8] sm:$0xff]
    %v85 = vld [vmem:[%s2 + $0xe0] sm:$0xff]
    %v86 = vld [vmem:[%s2 + $0xe8] sm:$0xff]
    %v87 = vld [vmem:[%s2 + $0xf0] sm:$0xff]
    %v88 = vld [vmem:[%s2 + $0xf8] sm:$0xff]
    %v89 = vld [vmem:[%s2 + $0x100] sm:$0xff]
    %v90 = vld [vmem:[%s2 + $0x108] sm:$0xff]
    %v91 = vld [vmem:[%s2 + $0x110] sm:$0xff]
    %v92 = vld [vmem:[%s2 + $0x118] sm:$0xff]
    %v93 = vld [vmem:[%s2 + $0x120] sm:$0xff]
    %v94 = vld [vmem:[%s2 + $0x128] sm:$0xff]
    %v95 = vld [vmem:[%s2 + $0x130] sm:$0xff]
    %v96 = vld [vmem:[%s2 + $0x138] sm:$0xff]
    %v97 = vld [vmem:[%s2 + $0x140] sm:$0xff]
    %v98 = vld [vmem:[%s2 + $0x148] sm:$0xff]
    %v99 = vld [vmem:[%s2 + $0x150] sm:$0xff]
    %v100 = vld [vmem:[%s2 + $0x158] sm:$0xff]
    %v101 = vld [vmem:[%s2 + $0x160] sm:$0xff]
    %v102 = vld [vmem:[%s2 + $0x168] sm:$0xff]
    %v103 = vld [vmem:[%s2 + $0x170] sm:$0xff]
    %v104 = vld [vmem:[%s2 + $0x178] sm:$0xff]
    %v105 = vld [vmem:[%s2 + $0x180] sm:$0xff]
    %v106 = vld [vmem:[%s2 + $0x188] sm:$0xff]
    %v107 = vld [vmem:[%s2 + $0x190] sm:$0xff]
    %v108 = vld [vmem:[%s2 + $0x198] sm:$0xff]
    %v109 = vld [vmem:[%s2 + $0x1a0] sm:$0xff]
    %v110 = vld [vmem:[%s2 + $0x1a8] sm:$0xff]
    %v111 = vld [vmem:[%s2 + $0x1b0] sm:$0xff]
    %v112 = vld [vmem:[%s2 + $0x1b8] sm:$0xff]
    %v113 = vld [vmem:[%s2 + $0x1c0] sm:$0xff]
    %v114 = vld [vmem:[%s2 + $0x1c8] sm:$0xff]
    %v115 = vld [vmem:[%s2 + $0x1d0] sm:$0xff]
    %v116 = vld [vmem:[%s2 + $0x1d8] sm:$0xff]
    %v117 = vld [vmem:[%s2 + $0x1e0] sm:$0xff]
    %v118 = vld [vmem:[%s2 + $0x1e8] sm:$0xff]
    %v119 = vld [vmem:[%s2 + $0x1f0] sm:$0xff]
    %v120 = vld [vmem:[%s2 + $0x1f8] sm:$0xff]
    %v121 = vld [vmem:[%s3] sm:$0xf]
    %v122 = vld [vmem:[%s0] sm:$0xff]
    %v123 = vld [vmem:[%s0 + $0x8] sm:$0xff]
    %v124 = vld [vmem:[%s0 + $0x10] sm:$0xff]
    %v125 = vld [vmem:[%s0 + $0x18] sm:$0xff]
    %v158 = vunpack.c.l.b16 %v25
    %v159 = vunpack.c.h.b16 %v25
    %v160 = vunpack.c.l.b16 %v26
    %v161 = vunpack.c.h.b16 %v26
    %v162 = vunpack.c.l.b16 %v27
    %v163 = vunpack.c.h.b16 %v27
    %v164 = vunpack.c.l.b16 %v28
    %v165 = vunpack.c.h.b16 %v28
    %v166 = vunpack.c.l.b16 %v29
    %v167 = vunpack.c.h.b16 %v29
    %v168 = vunpack.c.l.b16 %v30
    %v169 = vunpack.c.h.b16 %v30
    %v170 = vunpack.c.l.b16 %v31
    %v171 = vunpack.c.h.b16 %v31
    %v172 = vunpack.c.l.b16 %v32
    %v173 = vunpack.c.h.b16 %v32
    %v174 = vunpack.c.l.b16 %v33
    %v175 = vunpack.c.h.b16 %v33
    %v176 = vunpack.c.l.b16 %v34
    %v177 = vunpack.c.h.b16 %v34
    %v178 = vunpack.c.l.b16 %v35
    %v179 = vunpack.c.h.b16 %v35
    %v180 = vunpack.c.l.b16 %v36
    %v181 = vunpack.c.h.b16 %v36
    %v182 = vunpack.c.l.b16 %v37
    %v183 = vunpack.c.h.b16 %v37
    %v184 = vunpack.c.l.b16 %v38
    %v185 = vunpack.c.h.b16 %v38
    %v186 = vunpack.c.l.b16 %v39
    %v187 = vunpack.c.h.b16 %v39
    %v188 = vunpack.c.l.b16 %v40
    %v189 = vunpack.c.h.b16 %v40
    %v190 = vunpack.c.l.b16 %v41
    %v191 = vunpack.c.h.b16 %v41
    %v192 = vunpack.c.l.b16 %v42
    %v193 = vunpack.c.h.b16 %v42
    %v194 = vunpack.c.l.b16 %v43
    %v195 = vunpack.c.h.b16 %v43
    %v196 = vunpack.c.l.b16 %v44
    %v197 = vunpack.c.h.b16 %v44
    %v198 = vunpack.c.l.b16 %v45
    %v199 = vunpack.c.h.b16 %v45
    %v200 = vunpack.c.l.b16 %v46
    %v201 = vunpack.c.h.b16 %v46
    %v202 = vunpack.c.l.b16 %v47
    %v203 = vunpack.c.h.b16 %v47
    %v204 = vunpack.c.l.b16 %v48
    %v205 = vunpack.c.h.b16 %v48
    %v206 = vunpack.c.l.b16 %v49
    %v207 = vunpack.c.h.b16 %v49
    %v208 = vunpack.c.l.b16 %v50
    %v209 = vunpack.c.h.b16 %v50
    %v210 = vunpack.c.l.b16 %v51
    %v211 = vunpack.c.h.b16 %v51
    %v212 = vunpack.c.l.b16 %v52
    %v213 = vunpack.c.h.b16 %v52
    %v214 = vunpack.c.l.b16 %v53
    %v215 = vunpack.c.h.b16 %v53
    %v216 = vunpack.c.l.b16 %v54
    %v217 = vunpack.c.h.b16 %v54
    %v218 = vunpack.c.l.b16 %v55
    %v219 = vunpack.c.h.b16 %v55
    %v220 = vunpack.c.l.b16 %v56
    %v221 = vunpack.c.h.b16 %v56
    %v222 = vpack.c.b16 %v162, %v158
    %v223 = vpack.c.b16 %v163, %v159
    %v224 = vpack.c.b16 %v164, %v160
    %v225 = vpack.c.b16 %v165, %v161
    %v226 = vpack.c.b16 %v170, %v166
    %v227 = vpack.c.b16 %v171, %v167
    %v228 = vpack.c.b16 %v172, %v168
    %v229 = vpack.c.b16 %v173, %v169
    %v230 = vpack.c.b16 %v178, %v174
    %v231 = vpack.c.b16 %v179, %v175
    %v232 = vpack.c.b16 %v180, %v176
    %v233 = vpack.c.b16 %v181, %v177
    %v234 = vpack.c.b16 %v186, %v182
    %v235 = vpack.c.b16 %v187, %v183
    %v236 = vpack.c.b16 %v188, %v184
    %v237 = vpack.c.b16 %v189, %v185
    %v238 = vpack.c.b16 %v194, %v190
    %v239 = vpack.c.b16 %v195, %v191
    %v240 = vpack.c.b16 %v196, %v192
    %v241 = vpack.c.b16 %v197, %v193
    %v242 = vpack.c.b16 %v202, %v198
    %v243 = vpack.c.b16 %v203, %v199
    %v244 = vpack.c.b16 %v204, %v200
    %v245 = vpack.c.b16 %v205, %v201
    %v246 = vpack.c.b16 %v210, %v206
    %v247 = vpack.c.b16 %v211, %v207
    %v248 = vpack.c.b16 %v212, %v208
    %v249 = vpack.c.b16 %v213, %v209
    %v250 = vpack.c.b16 %v218, %v214
    %v251 = vpack.c.b16 %v219, %v215
    %v252 = vpack.c.b16 %v220, %v216
    %v253 = vpack.c.b16 %v221, %v217
    %286 = vmatprep.subr.bf16.mxu0 %v251
    %287 = vmatpush1.bf16.msra.mxu0 %v250
    %288 = vmatprep.subr.bf16.mxu0 %v247
    %289 = vmatpush1.bf16.msra.mxu0 %v246
    %290 = vmatprep.subr.bf16.mxu0 %v243
    %291 = vmatpush1.bf16.msra.mxu0 %v242
    %292 = vmatprep.subr.bf16.mxu0 %v239
    %293 = vmatpush1.bf16.msra.mxu0 %v238
    %294 = vmatprep.subr.bf16.mxu0 %v235
    %295 = vmatpush1.bf16.msra.mxu0 %v234
    %296 = vmatprep.subr.bf16.mxu0 %v231
    %297 = vmatpush1.bf16.msra.mxu0 %v230
    %298 = vmatprep.subr.bf16.mxu0 %v227
    %299 = vmatpush1.bf16.msra.mxu0 %v226
    %300 = vmatprep.subr.bf16.mxu0 %v223
    %301 = vmatpush1.bf16.msra.mxu0 %v222
    %302 = vmatprep.subr.bf16.mxu0 0
    %303 = vmatpush2.bf16.msra.mxu0 0
    %304 = vmatprep.subr.bf16.mxu0 0
    %305 = vmatpush2.bf16.msra.mxu0 0
    %306 = vmatprep.subr.bf16.mxu0 0
    %307 = vmatpush2.bf16.msra.mxu0 0
    %308 = vmatprep.subr.bf16.mxu0 0
    %309 = vmatpush2.bf16.msra.mxu0 0
    %310 = vmatprep.subr.bf16.mxu0 0
    %311 = vmatpush2.bf16.msra.mxu0 0
    %312 = vmatprep.subr.bf16.mxu0 0
    %313 = vmatpush2.bf16.msra.mxu0 0
    %314 = vmatprep.subr.bf16.mxu0 0
    %315 = vmatpush2.bf16.msra.mxu0 0
    %316 = vmatprep.subr.bf16.mxu0 0
    %317 = vmatpush2.bf16.msra.mxu0 0
    %318 = vmatprep.mubr.bf16.mxu0 0
    %319 = vmatmul.mubr.bf16.gmra.mxu0 0
    %v320 = vpop.f32.mrf.mxu0
    %v321 = vadd.f32 0.0, %v320
    %v322 = vpop.f32.mrf.mxu0
    %v323 = vadd.f32 0.0, %v322
    %v324 = vpop.f32.mrf.mxu0
    %v325 = vpop.f32.mrf.mxu0
    %326 = vdwg.mxu0
    %327 = vmatprep.subr.bf16.mxu0 %v253
    %328 = vmatpush1.bf16.msra.mxu0 %v252
    %329 = vmatprep.subr.bf16.mxu0 %v249
    %330 = vmatpush1.bf16.msra.mxu0 %v248
    %331 = vmatprep.subr.bf16.mxu0 %v245
    %332 = vmatpush1.bf16.msra.mxu0 %v244
    %333 = vmatprep.subr.bf16.mxu0 %v241
    %334 = vmatpush1.bf16.msra.mxu0 %v240
    %335 = vmatprep.subr.bf16.mxu0 %v237
    %336 = vmatpush1.bf16.msra.mxu0 %v236
    %337 = vmatprep.subr.bf16.mxu0 %v233
    %338 = vmatpush1.bf16.msra.mxu0 %v232
    %339 = vmatprep.subr.bf16.mxu0 %v229
    %340 = vmatpush1.bf16.msra.mxu0 %v228
    %341 = vmatprep.subr.bf16.mxu0 %v225
    %342 = vmatpush1.bf16.msra.mxu0 %v224
    %343 = vmatprep.subr.bf16.mxu0 0
    %344 = vmatpush2.bf16.msra.mxu0 0
    %345 = vmatprep.subr.bf16.mxu0 0
    %346 = vmatpush2.bf16.msra.mxu0 0
    %347 = vmatprep.subr.bf16.mxu0 0
    %348 = vmatpush2.bf16.msra.mxu0 0
    %349 = vmatprep.subr.bf16.mxu0 0
    %350 = vmatpush2.bf16.msra.mxu0 0
    %351 = vmatprep.subr.bf16.mxu0 0
    %352 = vmatpush2.bf16.msra.mxu0 0
    %353 = vmatprep.subr.bf16.mxu0 0
    %354 = vmatpush2.bf16.msra.mxu0 0
    %355 = vmatprep.subr.bf16.mxu0 0
    %356 = vmatpush2.bf16.msra.mxu0 0
    %357 = vmatprep.subr.bf16.mxu0 0
    %358 = vmatpush2.bf16.msra.mxu0 0
    %359 = vmatprep.mubr.bf16.mxu0 0
    %360 = vmatmul.mubr.bf16.gmra.mxu0 0
    %v361 = vpop.f32.mrf.mxu0
    %v362 = vadd.f32 0.0, %v361
    %v363 = vpop.f32.mrf.mxu0
    %v364 = vadd.f32 0.0, %v363
    %v365 = vpop.f32.mrf.mxu0
    %v366 = vpop.f32.mrf.mxu0
    %367 = vdwg.mxu0
    %v368 = vadd.f32 %v122, %v321
    %v369 = vadd.f32 %v123, %v323
    %v370 = vadd.f32 %v124, %v362
    %v371 = vadd.f32 %v125, %v364
    %v372 = vxor.u32 %v368, 2147483648
    %v373 = vxor.u32 %v369, 2147483648
    %v374 = vxor.u32 %v370, 2147483648
    %v375 = vmul.f32 %v372, 1.442695
    %v376 = vpow.pop %v375
    %v377 = vmul.f32 %v373, 1.442695
    %v378 = vpow.pop %v377
    %v379 = vmul.f32 %v374, 1.442695
    %v380 = vpow.pop %v379
    %v381 = vadd.f32 %v376, 1.0
    %v382 = vadd.f32 %v378, 1.0
    %v383 = vadd.f32 %v380, 1.0
    %v384 = vrcp.pop %v381
    %v385 = vmul.f32 1.0, %v384
    %v386 = vrcp.pop %v382
    %v387 = vmul.f32 1.0, %v386
    %v388 = vrcp.pop %v383
    %v389 = vmul.f32 1.0, %v388
    %v390 = vtanh.pop %v371
    %v391 = vmul.f32 %v387, 0.0
    %v392 = vmul.f32 %v385, %v390
    %v393 = vadd.f32 %v391, %v392
    %v394 = vtanh.pop %v393
    %v395 = vmul.f32 %v389, %v394
    %v396 = vpack.c.bf16 %v395, %v395
    %v397 = vpack.c.bf16 0.0, 0.0
    %v399 = vlaneseq
    %v400 = vshrl.u32 %v399, 7
    %v401 = vsub.s32 0, %v400
    %v402 = vrot.slane %v121, %v401
    %v403 = vlaneseq
    %v404 = vshrl.u32 %v403, 7
    %v405 = vsub.s32 1, %v404
    %v406 = vrot.slane %v121, %v405
    %v407 = vlaneseq
    %v408 = vshrl.u32 %v407, 7
    %v409 = vsub.s32 2, %v408
    %v410 = vrot.slane %v121, %v409
    %v411 = vlaneseq
    %v412 = vshrl.u32 %v411, 7
    %v413 = vsub.s32 3, %v412
    %v414 = vrot.slane %v121, %v413
    %v483 = vunpack.c.l.b16 %v57
    %v484 = vunpack.c.h.b16 %v57
    %v485 = vunpack.c.l.b16 %v58
    %v486 = vunpack.c.h.b16 %v58
    %v487 = vunpack.c.l.b16 %v59
    %v488 = vunpack.c.h.b16 %v59
    %v489 = vunpack.c.l.b16 %v60
    %v490 = vunpack.c.h.b16 %v60
    %v491 = vunpack.c.l.b16 %v61
    %v492 = vunpack.c.h.b16 %v61
    %v493 = vunpack.c.l.b16 %v62
    %v494 = vunpack.c.h.b16 %v62
    %v495 = vunpack.c.l.b16 %v63
    %v496 = vunpack.c.h.b16 %v63
    %v497 = vunpack.c.l.b16 %v64
    %v498 = vunpack.c.h.b16 %v64
    %v499 = vunpack.c.l.b16 %v65
    %v500 = vunpack.c.h.b16 %v65
    %v501 = vunpack.c.l.b16 %v66
    %v502 = vunpack.c.h.b16 %v66
    %v503 = vunpack.c.l.b16 %v67
    %v504 = vunpack.c.h.b16 %v67
    %v505 = vunpack.c.l.b16 %v68
    %v506 = vunpack.c.h.b16 %v68
    %v507 = vunpack.c.l.b16 %v69
    %v508 = vunpack.c.h.b16 %v69
    %v509 = vunpack.c.l.b16 %v70
    %v510 = vunpack.c.h.b16 %v70
    %v511 = vunpack.c.l.b16 %v71
    %v512 = vunpack.c.h.b16 %v71
    %v513 = vunpack.c.l.b16 %v72
    %v514 = vunpack.c.h.b16 %v72
    %v515 = vunpack.c.l.b16 %v73
    %v516 = vunpack.c.h.b16 %v73
    %v517 = vunpack.c.l.b16 %v74
    %v518 = vunpack.c.h.b16 %v74
    %v519 = vunpack.c.l.b16 %v75
    %v520 = vunpack.c.h.b16 %v75
    %v521 = vunpack.c.l.b16 %v76
    %v522 = vunpack.c.h.b16 %v76
    %v523 = vunpack.c.l.b16 %v77
    %v524 = vunpack.c.h.b16 %v77
    %v525 = vunpack.c.l.b16 %v78
    %v526 = vunpack.c.h.b16 %v78
    %v527 = vunpack.c.l.b16 %v79
    %v528 = vunpack.c.h.b16 %v79
    %v529 = vunpack.c.l.b16 %v80
    %v530 = vunpack.c.h.b16 %v80
    %v531 = vunpack.c.l.b16 %v81
    %v532 = vunpack.c.h.b16 %v81
    %v533 = vunpack.c.l.b16 %v82
    %v534 = vunpack.c.h.b16 %v82
    %v535 = vunpack.c.l.b16 %v83
    %v536 = vunpack.c.h.b16 %v83
    %v537 = vunpack.c.l.b16 %v84
    %v538 = vunpack.c.h.b16 %v84
    %v539 = vunpack.c.l.b16 %v85
    %v540 = vunpack.c.h.b16 %v85
    %v541 = vunpack.c.l.b16 %v86
    %v542 = vunpack.c.h.b16 %v86
    %v543 = vunpack.c.l.b16 %v87
    %v544 = vunpack.c.h.b16 %v87
    %v545 = vunpack.c.l.b16 %v88
    %v546 = vunpack.c.h.b16 %v88
    %v547 = vunpack.c.l.b16 %v89
    %v548 = vunpack.c.h.b16 %v89
    %v549 = vunpack.c.l.b16 %v90
    %v550 = vunpack.c.h.b16 %v90
    %v551 = vunpack.c.l.b16 %v91
    %v552 = vunpack.c.h.b16 %v91
    %v553 = vunpack.c.l.b16 %v92
    %v554 = vunpack.c.h.b16 %v92
    %v555 = vunpack.c.l.b16 %v93
    %v556 = vunpack.c.h.b16 %v93
    %v557 = vunpack.c.l.b16 %v94
    %v558 = vunpack.c.h.b16 %v94
    %v559 = vunpack.c.l.b16 %v95
    %v560 = vunpack.c.h.b16 %v95
    %v561 = vunpack.c.l.b16 %v96
    %v562 = vunpack.c.h.b16 %v96
    %v563 = vunpack.c.l.b16 %v97
    %v564 = vunpack.c.h.b16 %v97
    %v565 = vunpack.c.l.b16 %v98
    %v566 = vunpack.c.h.b16 %v98
    %v567 = vunpack.c.l.b16 %v99
    %v568 = vunpack.c.h.b16 %v99
    %v569 = vunpack.c.l.b16 %v100
    %v570 = vunpack.c.h.b16 %v100
    %v571 = vunpack.c.l.b16 %v101
    %v572 = vunpack.c.h.b16 %v101
    %v573 = vunpack.c.l.b16 %v102
    %v574 = vunpack.c.h.b16 %v102
    %v575 = vunpack.c.l.b16 %v103
    %v576 = vunpack.c.h.b16 %v103
    %v577 = vunpack.c.l.b16 %v104
    %v578 = vunpack.c.h.b16 %v104
    %v579 = vunpack.c.l.b16 %v105
    %v580 = vunpack.c.h.b16 %v105
    %v581 = vunpack.c.l.b16 %v106
    %v582 = vunpack.c.h.b16 %v106
    %v583 = vunpack.c.l.b16 %v107
    %v584 = vunpack.c.h.b16 %v107
    %v585 = vunpack.c.l.b16 %v108
    %v586 = vunpack.c.h.b16 %v108
    %v587 = vunpack.c.l.b16 %v109
    %v588 = vunpack.c.h.b16 %v109
    %v589 = vunpack.c.l.b16 %v110
    %v590 = vunpack.c.h.b16 %v110
    %v591 = vunpack.c.l.b16 %v111
    %v592 = vunpack.c.h.b16 %v111
    %v593 = vunpack.c.l.b16 %v112
    %v594 = vunpack.c.h.b16 %v112
    %v595 = vunpack.c.l.b16 %v113
    %v596 = vunpack.c.h.b16 %v113
    %v597 = vunpack.c.l.b16 %v114
    %v598 = vunpack.c.h.b16 %v114
    %v599 = vunpack.c.l.b16 %v115
    %v600 = vunpack.c.h.b16 %v115
    %v601 = vunpack.c.l.b16 %v116
    %v602 = vunpack.c.h.b16 %v116
    %v603 = vunpack.c.l.b16 %v117
    %v604 = vunpack.c.h.b16 %v117
    %v605 = vunpack.c.l.b16 %v118
    %v606 = vunpack.c.h.b16 %v118
    %v607 = vunpack.c.l.b16 %v119
    %v608 = vunpack.c.h.b16 %v119
    %v609 = vunpack.c.l.b16 %v120
    %v610 = vunpack.c.h.b16 %v120
    %v611 = vpack.c.b16 %v487, %v483
    %v612 = vpack.c.b16 %v488, %v484
    %v613 = vpack.c.b16 %v489, %v485
    %v614 = vpack.c.b16 %v490, %v486
    %v615 = vpack.c.b16 %v495, %v491
    %v616 = vpack.c.b16 %v496, %v492
    %v617 = vpack.c.b16 %v497, %v493
    %v618 = vpack.c.b16 %v498, %v494
    %v619 = vpack.c.b16 %v503, %v499
    %v620 = vpack.c.b16 %v504, %v500
    %v621 = vpack.c.b16 %v505, %v501
    %v622 = vpack.c.b16 %v506, %v502
    %v623 = vpack.c.b16 %v511, %v507
    %v624 = vpack.c.b16 %v512, %v508
    %v625 = vpack.c.b16 %v513, %v509
    %v626 = vpack.c.b16 %v514, %v510
    %v627 = vpack.c.b16 %v519, %v515
    %v628 = vpack.c.b16 %v520, %v516
    %v629 = vpack.c.b16 %v521, %v517
    %v630 = vpack.c.b16 %v522, %v518
    %v631 = vpack.c.b16 %v527, %v523
    %v632 = vpack.c.b16 %v528, %v524
    %v633 = vpack.c.b16 %v529, %v525
    %v634 = vpack.c.b16 %v530, %v526
    %v635 = vpack.c.b16 %v535, %v531
    %v636 = vpack.c.b16 %v536, %v532
    %v637 = vpack.c.b16 %v537, %v533
    %v638 = vpack.c.b16 %v538, %v534
    %v639 = vpack.c.b16 %v543, %v539
    %v640 = vpack.c.b16 %v544, %v540
    %v641 = vpack.c.b16 %v545, %v541
    %v642 = vpack.c.b16 %v546, %v542
    %v643 = vpack.c.b16 %v551, %v547
    %v644 = vpack.c.b16 %v552, %v548
    %v645 = vpack.c.b16 %v553, %v549
    %v646 = vpack.c.b16 %v554, %v550
    %v647 = vpack.c.b16 %v559, %v555
    %v648 = vpack.c.b16 %v560, %v556
    %v649 = vpack.c.b16 %v561, %v557
    %v650 = vpack.c.b16 %v562, %v558
    %v651 = vpack.c.b16 %v567, %v563
    %v652 = vpack.c.b16 %v568, %v564
    %v653 = vpack.c.b16 %v569, %v565
    %v654 = vpack.c.b16 %v570, %v566
    %v655 = vpack.c.b16 %v575, %v571
    %v656 = vpack.c.b16 %v576, %v572
    %v657 = vpack.c.b16 %v577, %v573
    %v658 = vpack.c.b16 %v578, %v574
    %v659 = vpack.c.b16 %v583, %v579
    %v660 = vpack.c.b16 %v584, %v580
    %v661 = vpack.c.b16 %v585, %v581
    %v662 = vpack.c.b16 %v586, %v582
    %v663 = vpack.c.b16 %v591, %v587
    %v664 = vpack.c.b16 %v592, %v588
    %v665 = vpack.c.b16 %v593, %v589
    %v666 = vpack.c.b16 %v594, %v590
    %v667 = vpack.c.b16 %v599, %v595
    %v668 = vpack.c.b16 %v600, %v596
    %v669 = vpack.c.b16 %v601, %v597
    %v670 = vpack.c.b16 %v602, %v598
    %v671 = vpack.c.b16 %v607, %v603
    %v672 = vpack.c.b16 %v608, %v604
    %v673 = vpack.c.b16 %v609, %v605
    %v674 = vpack.c.b16 %v610, %v606
    %739 = vmatprep.subr.bf16.mxu0 %v640
    %740 = vmatpush1.bf16.msra.mxu0 %v639
    %741 = vmatprep.subr.bf16.mxu0 %v636
    %742 = vmatpush1.bf16.msra.mxu0 %v635
    %743 = vmatprep.subr.bf16.mxu0 %v632
    %744 = vmatpush1.bf16.msra.mxu0 %v631
    %745 = vmatprep.subr.bf16.mxu0 %v628
    %746 = vmatpush1.bf16.msra.mxu0 %v627
    %747 = vmatprep.subr.bf16.mxu0 %v624
    %748 = vmatpush1.bf16.msra.mxu0 %v623
    %749 = vmatprep.subr.bf16.mxu0 %v620
    %750 = vmatpush1.bf16.msra.mxu0 %v619
    %751 = vmatprep.subr.bf16.mxu0 %v616
    %752 = vmatpush1.bf16.msra.mxu0 %v615
    %753 = vmatprep.subr.bf16.mxu0 %v612
    %754 = vmatpush1.bf16.msra.mxu0 %v611
    %755 = vmatprep.subr.bf16.mxu0 %v672
    %756 = vmatpush2.bf16.msra.mxu0 %v671
    %757 = vmatprep.subr.bf16.mxu0 %v668
    %758 = vmatpush2.bf16.msra.mxu0 %v667
    %759 = vmatprep.subr.bf16.mxu0 %v664
    %760 = vmatpush2.bf16.msra.mxu0 %v663
    %761 = vmatprep.subr.bf16.mxu0 %v660
    %762 = vmatpush2.bf16.msra.mxu0 %v659
    %763 = vmatprep.subr.bf16.mxu0 %v656
    %764 = vmatpush2.bf16.msra.mxu0 %v655
    %765 = vmatprep.subr.bf16.mxu0 %v652
    %766 = vmatpush2.bf16.msra.mxu0 %v651
    %767 = vmatprep.subr.bf16.mxu0 %v648
    %768 = vmatpush2.bf16.msra.mxu0 %v647
    %769 = vmatprep.subr.bf16.mxu0 %v644
    %770 = vmatpush2.bf16.msra.mxu0 %v643
    %771 = vmatprep.mubr.bf16.mxu0 %v397
    %772 = vmatmul.mubr.bf16.gmra.mxu0 %v396
    %v773 = vpop.f32.mrf.mxu0
    %v774 = vadd.f32 %v402, %v773
    %v775 = vpop.f32.mrf.mxu0
    %v776 = vadd.f32 %v406, %v775
    %v777 = vpop.f32.mrf.mxu0
    %v778 = vpop.f32.mrf.mxu0
    %779 = vdwg.mxu0
    %780 = vmatprep.subr.bf16.mxu0 %v642
    %781 = vmatpush1.bf16.msra.mxu0 %v641
    %782 = vmatprep.subr.bf16.mxu0 %v638
    %783 = vmatpush1.bf16.msra.mxu0 %v637
    %784 = vmatprep.subr.bf16.mxu0 %v634
    %785 = vmatpush1.bf16.msra.mxu0 %v633
    %786 = vmatprep.subr.bf16.mxu0 %v630
    %787 = vmatpush1.bf16.msra.mxu0 %v629
    %788 = vmatprep.subr.bf16.mxu0 %v626
    %789 = vmatpush1.bf16.msra.mxu0 %v625
    %790 = vmatprep.subr.bf16.mxu0 %v622
    %791 = vmatpush1.bf16.msra.mxu0 %v621
    %792 = vmatprep.subr.bf16.mxu0 %v618
    %793 = vmatpush1.bf16.msra.mxu0 %v617
    %794 = vmatprep.subr.bf16.mxu0 %v614
    %795 = vmatpush1.bf16.msra.mxu0 %v613
    %796 = vmatprep.subr.bf16.mxu0 %v674
    %797 = vmatpush2.bf16.msra.mxu0 %v673
    %798 = vmatprep.subr.bf16.mxu0 %v670
    %799 = vmatpush2.bf16.msra.mxu0 %v669
    %800 = vmatprep.subr.bf16.mxu0 %v666
    %801 = vmatpush2.bf16.msra.mxu0 %v665
    %802 = vmatprep.subr.bf16.mxu0 %v662
    %803 = vmatpush2.bf16.msra.mxu0 %v661
    %804 = vmatprep.subr.bf16.mxu0 %v658
    %805 = vmatpush2.bf16.msra.mxu0 %v657
    %806 = vmatprep.subr.bf16.mxu0 %v654
    %807 = vmatpush2.bf16.msra.mxu0 %v653
    %808 = vmatprep.subr.bf16.mxu0 %v650
    %809 = vmatpush2.bf16.msra.mxu0 %v649
    %810 = vmatprep.subr.bf16.mxu0 %v646
    %811 = vmatpush2.bf16.msra.mxu0 %v645
    %812 = vmatprep.mubr.bf16.mxu0 %v397
    %813 = vmatmul.mubr.bf16.gmra.mxu0 %v396
    %v814 = vpop.f32.mrf.mxu0
    %v815 = vadd.f32 %v410, %v814
    %v816 = vpop.f32.mrf.mxu0
    %v817 = vadd.f32 %v414, %v816
    %v818 = vpop.f32.mrf.mxu0
    %v819 = vpop.f32.mrf.mxu0
    %820 = vdwg.mxu0
    %v821 = vxor.u32 %v774, 2147483648
    %v822 = vxor.u32 %v776, 2147483648
    %v823 = vxor.u32 %v815, 2147483648
    %v824 = vmul.f32 %v821, 1.442695
    %v825 = vpow.pop %v824
    %v826 = vmul.f32 %v822, 1.442695
    %v827 = vpow.pop %v826
    %v828 = vmul.f32 %v823, 1.442695
    %v829 = vpow.pop %v828
    %v830 = vadd.f32 %v825, 1.0
    %v831 = vadd.f32 %v827, 1.0
    %v832 = vadd.f32 %v829, 1.0
    %v833 = vrcp.pop %v830
    %v834 = vmul.f32 1.0, %v833
    %v835 = vrcp.pop %v831
    %v836 = vmul.f32 1.0, %v835
    %v837 = vrcp.pop %v832
    %v838 = vmul.f32 1.0, %v837
    %v839 = vtanh.pop %v817
    %v840 = vmul.f32 %v836, 0.0
    %v841 = vmul.f32 %v834, %v839
    %v842 = vadd.f32 %v840, %v841
    %v843 = vtanh.pop %v842
    %v844 = vmul.f32 %v838, %v843
    %s845 = scalar_lea.vmem %s0, 32
    %v846 = vld [vmem:[%s845] sm:$0xff]
    %v847 = vld [vmem:[%s845 + $0x8] sm:$0xff]
    %v848 = vld [vmem:[%s845 + $0x10] sm:$0xff]
    %v849 = vld [vmem:[%s845 + $0x18] sm:$0xff]
    %850 = vmatprep.subr.bf16.mxu0 %v251
    %851 = vmatpush1.bf16.msra.mxu0 %v250
    %852 = vmatprep.subr.bf16.mxu0 %v247
    %853 = vmatpush1.bf16.msra.mxu0 %v246
    %854 = vmatprep.subr.bf16.mxu0 %v243
    %855 = vmatpush1.bf16.msra.mxu0 %v242
    %856 = vmatprep.subr.bf16.mxu0 %v239
    %857 = vmatpush1.bf16.msra.mxu0 %v238
    %858 = vmatprep.subr.bf16.mxu0 %v235
    %859 = vmatpush1.bf16.msra.mxu0 %v234
    %860 = vmatprep.subr.bf16.mxu0 %v231
    %861 = vmatpush1.bf16.msra.mxu0 %v230
    %862 = vmatprep.subr.bf16.mxu0 %v227
    %863 = vmatpush1.bf16.msra.mxu0 %v226
    %864 = vmatprep.subr.bf16.mxu0 %v223
    %865 = vmatpush1.bf16.msra.mxu0 %v222
    %866 = vmatprep.subr.bf16.mxu0 0
    %867 = vmatpush2.bf16.msra.mxu0 0
    %868 = vmatprep.subr.bf16.mxu0 0
    %869 = vmatpush2.bf16.msra.mxu0 0
    %870 = vmatprep.subr.bf16.mxu0 0
    %871 = vmatpush2.bf16.msra.mxu0 0
    %872 = vmatprep.subr.bf16.mxu0 0
    %873 = vmatpush2.bf16.msra.mxu0 0
    %874 = vmatprep.subr.bf16.mxu0 0
    %875 = vmatpush2.bf16.msra.mxu0 0
    %876 = vmatprep.subr.bf16.mxu0 0
    %877 = vmatpush2.bf16.msra.mxu0 0
    %878 = vmatprep.subr.bf16.mxu0 0
    %879 = vmatpush2.bf16.msra.mxu0 0
    %880 = vmatprep.subr.bf16.mxu0 0
    %881 = vmatpush2.bf16.msra.mxu0 0
    %882 = vmatprep.mubr.bf16.mxu0 0
    %883 = vmatmul.mubr.bf16.gmra.mxu0 %v396
    %v884 = vpop.f32.mrf.mxu0
    %v885 = vadd.f32 0.0, %v884
    %v886 = vpop.f32.mrf.mxu0
    %v887 = vadd.f32 0.0, %v886
    %v888 = vpop.f32.mrf.mxu0
    %v889 = vpop.f32.mrf.mxu0
    %890 = vdwg.mxu0
    %891 = vmatprep.subr.bf16.mxu0 %v253
    %892 = vmatpush1.bf16.msra.mxu0 %v252
    %893 = vmatprep.subr.bf16.mxu0 %v249
    %894 = vmatpush1.bf16.msra.mxu0 %v248
    %895 = vmatprep.subr.bf16.mxu0 %v245
    %896 = vmatpush1.bf16.msra.mxu0 %v244
    %897 = vmatprep.subr.bf16.mxu0 %v241
    %898 = vmatpush1.bf16.msra.mxu0 %v240
    %899 = vmatprep.subr.bf16.mxu0 %v237
    %900 = vmatpush1.bf16.msra.mxu0 %v236
    %901 = vmatprep.subr.bf16.mxu0 %v233
    %902 = vmatpush1.bf16.msra.mxu0 %v232
    %903 = vmatprep.subr.bf16.mxu0 %v229
    %904 = vmatpush1.bf16.msra.mxu0 %v228
    %905 = vmatprep.subr.bf16.mxu0 %v225
    %906 = vmatpush1.bf16.msra.mxu0 %v224
    %907 = vmatprep.subr.bf16.mxu0 0
    %908 = vmatpush2.bf16.msra.mxu0 0
    %909 = vmatprep.subr.bf16.mxu0 0
    %910 = vmatpush2.bf16.msra.mxu0 0
    %911 = vmatprep.subr.bf16.mxu0 0
    %912 = vmatpush2.bf16.msra.mxu0 0
    %913 = vmatprep.subr.bf16.mxu0 0
    %914 = vmatpush2.bf16.msra.mxu0 0
    %915 = vmatprep.subr.bf16.mxu0 0
    %916 = vmatpush2.bf16.msra.mxu0 0
    %917 = vmatprep.subr.bf16.mxu0 0
    %918 = vmatpush2.bf16.msra.mxu0 0
    %919 = vmatprep.subr.bf16.mxu0 0
    %920 = vmatpush2.bf16.msra.mxu0 0
    %921 = vmatprep.subr.bf16.mxu0 0
    %922 = vmatpush2.bf16.msra.mxu0 0
    %923 = vmatprep.mubr.bf16.mxu0 0
    %924 = vmatmul.mubr.bf16.gmra.mxu0 %v396
    %v925 = vpop.f32.mrf.mxu0
    %v926 = vadd.f32 0.0, %v925
    %v927 = vpop.f32.mrf.mxu0
    %v928 = vadd.f32 0.0, %v927
    %v929 = vpop.f32.mrf.mxu0
    %v930 = vpop.f32.mrf.mxu0
    %931 = vdwg.mxu0
    %v932 = vadd.f32 %v846, %v885
    %v933 = vadd.f32 %v847, %v887
    %v934 = vadd.f32 %v848, %v926
    %v935 = vadd.f32 %v849, %v928
    %v936 = vxor.u32 %v932, 2147483648
    %v937 = vxor.u32 %v933, 2147483648
    %v938 = vxor.u32 %v934, 2147483648
    %v939 = vmul.f32 %v936, 1.442695
    %v940 = vpow.pop %v939
    %v941 = vmul.f32 %v937, 1.442695
    %v942 = vpow.pop %v941
    %v943 = vmul.f32 %v938, 1.442695
    %v944 = vpow.pop %v943
    %v945 = vadd.f32 %v940, 1.0
    %v946 = vadd.f32 %v942, 1.0
    %v947 = vadd.f32 %v944, 1.0
    %v948 = vrcp.pop %v945
    %v949 = vmul.f32 1.0, %v948
    %v950 = vrcp.pop %v946
    %v951 = vmul.f32 1.0, %v950
    %v952 = vrcp.pop %v947
    %v953 = vmul.f32 1.0, %v952
    %v954 = vtanh.pop %v935
    %v955 = vmul.f32 %v951, %v393
    %v956 = vmul.f32 %v949, %v954
    %v957 = vadd.f32 %v955, %v956
    %v958 = vtanh.pop %v957
    %v959 = vmul.f32 %v953, %v958
    %v960 = vpack.c.bf16 %v959, %v959
    %v961 = vpack.c.bf16 %v844, %v844
    %962 = vmatprep.subr.bf16.mxu0 %v640
    %963 = vmatpush1.bf16.msra.mxu0 %v639
    %964 = vmatprep.subr.bf16.mxu0 %v636
    %965 = vmatpush1.bf16.msra.mxu0 %v635
    %966 = vmatprep.subr.bf16.mxu0 %v632
    %967 = vmatpush1.bf16.msra.mxu0 %v631
    %968 = vmatprep.subr.bf16.mxu0 %v628
    %969 = vmatpush1.bf16.msra.mxu0 %v627
    %970 = vmatprep.subr.bf16.mxu0 %v624
    %971 = vmatpush1.bf16.msra.mxu0 %v623
    %972 = vmatprep.subr.bf16.mxu0 %v620
    %973 = vmatpush1.bf16.msra.mxu0 %v619
    %974 = vmatprep.subr.bf16.mxu0 %v616
    %975 = vmatpush1.bf16.msra.mxu0 %v615
    %976 = vmatprep.subr.bf16.mxu0 %v612
    %977 = vmatpush1.bf16.msra.mxu0 %v611
    %978 = vmatprep.subr.bf16.mxu0 %v672
    %979 = vmatpush2.bf16.msra.mxu0 %v671
    %980 = vmatprep.subr.bf16.mxu0 %v668
    %981 = vmatpush2.bf16.msra.mxu0 %v667
    %982 = vmatprep.subr.bf16.mxu0 %v664
    %983 = vmatpush2.bf16.msra.mxu0 %v663
    %984 = vmatprep.subr.bf16.mxu0 %v660
    %985 = vmatpush2.bf16.msra.mxu0 %v659
    %986 = vmatprep.subr.bf16.mxu0 %v656
    %987 = vmatpush2.bf16.msra.mxu0 %v655
    %988 = vmatprep.subr.bf16.mxu0 %v652
    %989 = vmatpush2.bf16.msra.mxu0 %v651
    %990 = vmatprep.subr.bf16.mxu0 %v648
    %991 = vmatpush2.bf16.msra.mxu0 %v647
    %992 = vmatprep.subr.bf16.mxu0 %v644
    %993 = vmatpush2.bf16.msra.mxu0 %v643
    %994 = vmatprep.mubr.bf16.mxu0 %v961
    %995 = vmatmul.mubr.bf16.gmra.mxu0 %v960
    %v996 = vpop.f32.mrf.mxu0
    %v997 = vadd.f32 %v402, %v996
    %v998 = vpop.f32.mrf.mxu0
    %v999 = vadd.f32 %v406, %v998
    %v1000 = vpop.f32.mrf.mxu0
    %v1001 = vpop.f32.mrf.mxu0
    %1002 = vdwg.mxu0
    %1003 = vmatprep.subr.bf16.mxu0 %v642
    %1004 = vmatpush1.bf16.msra.mxu0 %v641
    %1005 = vmatprep.subr.bf16.mxu0 %v638
    %1006 = vmatpush1.bf16.msra.mxu0 %v637
    %1007 = vmatprep.subr.bf16.mxu0 %v634
    %1008 = vmatpush1.bf16.msra.mxu0 %v633
    %1009 = vmatprep.subr.bf16.mxu0 %v630
    %1010 = vmatpush1.bf16.msra.mxu0 %v629
    %1011 = vmatprep.subr.bf16.mxu0 %v626
    %1012 = vmatpush1.bf16.msra.mxu0 %v625
    %1013 = vmatprep.subr.bf16.mxu0 %v622
    %1014 = vmatpush1.bf16.msra.mxu0 %v621
    %1015 = vmatprep.subr.bf16.mxu0 %v618
    %1016 = vmatpush1.bf16.msra.mxu0 %v617
    %1017 = vmatprep.subr.bf16.mxu0 %v614
    %1018 = vmatpush1.bf16.msra.mxu0 %v613
    %1019 = vmatprep.subr.bf16.mxu0 %v674
    %1020 = vmatpush2.bf16.msra.mxu0 %v673
    %1021 = vmatprep.subr.bf16.mxu0 %v670
    %1022 = vmatpush2.bf16.msra.mxu0 %v669
    %1023 = vmatprep.subr.bf16.mxu0 %v666
    %1024 = vmatpush2.bf16.msra.mxu0 %v665
    %1025 = vmatprep.subr.bf16.mxu0 %v662
    %1026 = vmatpush2.bf16.msra.mxu0 %v661
    %1027 = vmatprep.subr.bf16.mxu0 %v658
    %1028 = vmatpush2.bf16.msra.mxu0 %v657
    %1029 = vmatprep.subr.bf16.mxu0 %v654
    %1030 = vmatpush2.bf16.msra.mxu0 %v653
    %1031 = vmatprep.subr.bf16.mxu0 %v650
    %1032 = vmatpush2.bf16.msra.mxu0 %v649
    %1033 = vmatprep.subr.bf16.mxu0 %v646
    %1034 = vmatpush2.bf16.msra.mxu0 %v645
    %1035 = vmatprep.mubr.bf16.mxu0 %v961
    %1036 = vmatmul.mubr.bf16.gmra.mxu0 %v960
    %v1037 = vpop.f32.mrf.mxu0
    %v1038 = vadd.f32 %v410, %v1037
    %v1039 = vpop.f32.mrf.mxu0
    %v1040 = vadd.f32 %v414, %v1039
    %v1041 = vpop.f32.mrf.mxu0
    %v1042 = vpop.f32.mrf.mxu0
    %1043 = vdwg.mxu0
    %v1044 = vxor.u32 %v997, 2147483648
    %v1045 = vxor.u32 %v999, 2147483648
    %v1046 = vxor.u32 %v1038, 2147483648
    %v1047 = vmul.f32 %v1044, 1.442695
    %v1048 = vpow.pop %v1047
    %v1049 = vmul.f32 %v1045, 1.442695
    %v1050 = vpow.pop %v1049
    %v1051 = vmul.f32 %v1046, 1.442695
    %v1052 = vpow.pop %v1051
    %v1053 = vadd.f32 %v1048, 1.0
    %v1054 = vadd.f32 %v1050, 1.0
    %v1055 = vadd.f32 %v1052, 1.0
    %v1056 = vrcp.pop %v1053
    %v1057 = vmul.f32 1.0, %v1056
    %v1058 = vrcp.pop %v1054
    %v1059 = vmul.f32 1.0, %v1058
    %v1060 = vrcp.pop %v1055
    %v1061 = vmul.f32 1.0, %v1060
    %v1062 = vtanh.pop %v1040
    %v1063 = vmul.f32 %v1059, %v842
    %v1064 = vmul.f32 %v1057, %v1062
    %v1065 = vadd.f32 %v1063, %v1064
    %v1066 = vtanh.pop %v1065
    %v1067 = vmul.f32 %v1061, %v1066
    %s1068 = scalar_lea.vmem %s0, 64
    %v1069 = vld [vmem:[%s1068] sm:$0xff]
    %v1070 = vld [vmem:[%s1068 + $0x8] sm:$0xff]
    %v1071 = vld [vmem:[%s1068 + $0x10] sm:$0xff]
    %v1072 = vld [vmem:[%s1068 + $0x18] sm:$0xff]
    %1073 = vmatprep.subr.bf16.mxu0 %v251
    %1074 = vmatpush1.bf16.msra.mxu0 %v250
    %1075 = vmatprep.subr.bf16.mxu0 %v247
    %1076 = vmatpush1.bf16.msra.mxu0 %v246
    %1077 = vmatprep.subr.bf16.mxu0 %v243
    %1078 = vmatpush1.bf16.msra.mxu0 %v242
    %1079 = vmatprep.subr.bf16.mxu0 %v239
    %1080 = vmatpush1.bf16.msra.mxu0 %v238
    %1081 = vmatprep.subr.bf16.mxu0 %v235
    %1082 = vmatpush1.bf16.msra.mxu0 %v234
    %1083 = vmatprep.subr.bf16.mxu0 %v231
    %1084 = vmatpush1.bf16.msra.mxu0 %v230
    %1085 = vmatprep.subr.bf16.mxu0 %v227
    %1086 = vmatpush1.bf16.msra.mxu0 %v226
    %1087 = vmatprep.subr.bf16.mxu0 %v223
    %1088 = vmatpush1.bf16.msra.mxu0 %v222
    %1089 = vmatprep.subr.bf16.mxu0 0
    %1090 = vmatpush2.bf16.msra.mxu0 0
    %1091 = vmatprep.subr.bf16.mxu0 0
    %1092 = vmatpush2.bf16.msra.mxu0 0
    %1093 = vmatprep.subr.bf16.mxu0 0
    %1094 = vmatpush2.bf16.msra.mxu0 0
    %1095 = vmatprep.subr.bf16.mxu0 0
    %1096 = vmatpush2.bf16.msra.mxu0 0
    %1097 = vmatprep.subr.bf16.mxu0 0
    %1098 = vmatpush2.bf16.msra.mxu0 0
    %1099 = vmatprep.subr.bf16.mxu0 0
    %1100 = vmatpush2.bf16.msra.mxu0 0
    %1101 = vmatprep.subr.bf16.mxu0 0
    %1102 = vmatpush2.bf16.msra.mxu0 0
    %1103 = vmatprep.subr.bf16.mxu0 0
    %1104 = vmatpush2.bf16.msra.mxu0 0
    %1105 = vmatprep.mubr.bf16.mxu0 0
    %1106 = vmatmul.mubr.bf16.gmra.mxu0 %v960
    %v1107 = vpop.f32.mrf.mxu0
    %v1108 = vadd.f32 0.0, %v1107
    %v1109 = vpop.f32.mrf.mxu0
    %v1110 = vadd.f32 0.0, %v1109
    %v1111 = vpop.f32.mrf.mxu0
    %v1112 = vpop.f32.mrf.mxu0
    %1113 = vdwg.mxu0
    %1114 = vmatprep.subr.bf16.mxu0 %v253
    %1115 = vmatpush1.bf16.msra.mxu0 %v252
    %1116 = vmatprep.subr.bf16.mxu0 %v249
    %1117 = vmatpush1.bf16.msra.mxu0 %v248
    %1118 = vmatprep.subr.bf16.mxu0 %v245
    %1119 = vmatpush1.bf16.msra.mxu0 %v244
    %1120 = vmatprep.subr.bf16.mxu0 %v241
    %1121 = vmatpush1.bf16.msra.mxu0 %v240
    %1122 = vmatprep.subr.bf16.mxu0 %v237
    %1123 = vmatpush1.bf16.msra.mxu0 %v236
    %1124 = vmatprep.subr.bf16.mxu0 %v233
    %1125 = vmatpush1.bf16.msra.mxu0 %v232
    %1126 = vmatprep.subr.bf16.mxu0 %v229
    %1127 = vmatpush1.bf16.msra.mxu0 %v228
    %1128 = vmatprep.subr.bf16.mxu0 %v225
    %1129 = vmatpush1.bf16.msra.mxu0 %v224
    %1130 = vmatprep.subr.bf16.mxu0 0
    %1131 = vmatpush2.bf16.msra.mxu0 0
    %1132 = vmatprep.subr.bf16.mxu0 0
    %1133 = vmatpush2.bf16.msra.mxu0 0
    %1134 = vmatprep.subr.bf16.mxu0 0
    %1135 = vmatpush2.bf16.msra.mxu0 0
    %1136 = vmatprep.subr.bf16.mxu0 0
    %1137 = vmatpush2.bf16.msra.mxu0 0
    %1138 = vmatprep.subr.bf16.mxu0 0
    %1139 = vmatpush2.bf16.msra.mxu0 0
    %1140 = vmatprep.subr.bf16.mxu0 0
    %1141 = vmatpush2.bf16.msra.mxu0 0
    %1142 = vmatprep.subr.bf16.mxu0 0
    %1143 = vmatpush2.bf16.msra.mxu0 0
    %1144 = vmatprep.subr.bf16.mxu0 0
    %1145 = vmatpush2.bf16.msra.mxu0 0
    %1146 = vmatprep.mubr.bf16.mxu0 0
    %1147 = vmatmul.mubr.bf16.gmra.mxu0 %v960
    %v1148 = vpop.f32.mrf.mxu0
    %v1149 = vadd.f32 0.0, %v1148
    %v1150 = vpop.f32.mrf.mxu0
    %v1151 = vadd.f32 0.0, %v1150
    %v1152 = vpop.f32.mrf.mxu0
    %v1153 = vpop.f32.mrf.mxu0
    %1154 = vdwg.mxu0
    %v1155 = vadd.f32 %v1069, %v1108
    %v1156 = vadd.f32 %v1070, %v1110
    %v1157 = vadd.f32 %v1071, %v1149
    %v1158 = vadd.f32 %v1072, %v1151
    %v1159 = vxor.u32 %v1155, 2147483648
    %v1160 = vxor.u32 %v1156, 2147483648
    %v1161 = vxor.u32 %v1157, 2147483648
    %v1162 = vmul.f32 %v1159, 1.442695
    %v1163 = vpow.pop %v1162
    %v1164 = vmul.f32 %v1160, 1.442695
    %v1165 = vpow.pop %v1164
    %v1166 = vmul.f32 %v1161, 1.442695
    %v1167 = vpow.pop %v1166
    %v1168 = vadd.f32 %v1163, 1.0
    %v1169 = vadd.f32 %v1165, 1.0
    %v1170 = vadd.f32 %v1167, 1.0
    %v1171 = vrcp.pop %v1168
    %v1172 = vmul.f32 1.0, %v1171
    %v1173 = vrcp.pop %v1169
    %v1174 = vmul.f32 1.0, %v1173
    %v1175 = vrcp.pop %v1170
    %v1176 = vmul.f32 1.0, %v1175
    %v1177 = vtanh.pop %v1158
    %v1178 = vmul.f32 %v1174, %v957
    %v1179 = vmul.f32 %v1172, %v1177
    %v1180 = vadd.f32 %v1178, %v1179
    %v1181 = vtanh.pop %v1180
    %v1182 = vmul.f32 %v1176, %v1181
    %v1183 = vpack.c.bf16 %v1182, %v1182
    %v1184 = vpack.c.bf16 %v1067, %v1067
    %1185 = vmatprep.subr.bf16.mxu0 %v640
    %1186 = vmatpush1.bf16.msra.mxu0 %v639
    %1187 = vmatprep.subr.bf16.mxu0 %v636
    %1188 = vmatpush1.bf16.msra.mxu0 %v635
    %1189 = vmatprep.subr.bf16.mxu0 %v632
    %1190 = vmatpush1.bf16.msra.mxu0 %v631
    %1191 = vmatprep.subr.bf16.mxu0 %v628
    %1192 = vmatpush1.bf16.msra.mxu0 %v627
    %1193 = vmatprep.subr.bf16.mxu0 %v624
    %1194 = vmatpush1.bf16.msra.mxu0 %v623
    %1195 = vmatprep.subr.bf16.mxu0 %v620
    %1196 = vmatpush1.bf16.msra.mxu0 %v619
    %1197 = vmatprep.subr.bf16.mxu0 %v616
    %1198 = vmatpush1.bf16.msra.mxu0 %v615
    %1199 = vmatprep.subr.bf16.mxu0 %v612
    %1200 = vmatpush1.bf16.msra.mxu0 %v611
    %1201 = vmatprep.subr.bf16.mxu0 %v672
    %1202 = vmatpush2.bf16.msra.mxu0 %v671
    %1203 = vmatprep.subr.bf16.mxu0 %v668
    %1204 = vmatpush2.bf16.msra.mxu0 %v667
    %1205 = vmatprep.subr.bf16.mxu0 %v664
    %1206 = vmatpush2.bf16.msra.mxu0 %v663
    %1207 = vmatprep.subr.bf16.mxu0 %v660
    %1208 = vmatpush2.bf16.msra.mxu0 %v659
    %1209 = vmatprep.subr.bf16.mxu0 %v656
    %1210 = vmatpush2.bf16.msra.mxu0 %v655
    %1211 = vmatprep.subr.bf16.mxu0 %v652
    %1212 = vmatpush2.bf16.msra.mxu0 %v651
    %1213 = vmatprep.subr.bf16.mxu0 %v648
    %1214 = vmatpush2.bf16.msra.mxu0 %v647
    %1215 = vmatprep.subr.bf16.mxu0 %v644
    %1216 = vmatpush2.bf16.msra.mxu0 %v643
    %1217 = vmatprep.mubr.bf16.mxu0 %v1184
    %1218 = vmatmul.mubr.bf16.gmra.mxu0 %v1183
    %v1219 = vpop.f32.mrf.mxu0
    %v1220 = vadd.f32 %v402, %v1219
    %v1221 = vpop.f32.mrf.mxu0
    %v1222 = vadd.f32 %v406, %v1221
    %v1223 = vpop.f32.mrf.mxu0
    %v1224 = vpop.f32.mrf.mxu0
    %1225 = vdwg.mxu0
    %1226 = vmatprep.subr.bf16.mxu0 %v642
    %1227 = vmatpush1.bf16.msra.mxu0 %v641
    %1228 = vmatprep.subr.bf16.mxu0 %v638
    %1229 = vmatpush1.bf16.msra.mxu0 %v637
    %1230 = vmatprep.subr.bf16.mxu0 %v634
    %1231 = vmatpush1.bf16.msra.mxu0 %v633
    %1232 = vmatprep.subr.bf16.mxu0 %v630
    %1233 = vmatpush1.bf16.msra.mxu0 %v629
    %1234 = vmatprep.subr.bf16.mxu0 %v626
    %1235 = vmatpush1.bf16.msra.mxu0 %v625
    %1236 = vmatprep.subr.bf16.mxu0 %v622
    %1237 = vmatpush1.bf16.msra.mxu0 %v621
    %1238 = vmatprep.subr.bf16.mxu0 %v618
    %1239 = vmatpush1.bf16.msra.mxu0 %v617
    %1240 = vmatprep.subr.bf16.mxu0 %v614
    %1241 = vmatpush1.bf16.msra.mxu0 %v613
    %1242 = vmatprep.subr.bf16.mxu0 %v674
    %1243 = vmatpush2.bf16.msra.mxu0 %v673
    %1244 = vmatprep.subr.bf16.mxu0 %v670
    %1245 = vmatpush2.bf16.msra.mxu0 %v669
    %1246 = vmatprep.subr.bf16.mxu0 %v666
    %1247 = vmatpush2.bf16.msra.mxu0 %v665
    %1248 = vmatprep.subr.bf16.mxu0 %v662
    %1249 = vmatpush2.bf16.msra.mxu0 %v661
    %1250 = vmatprep.subr.bf16.mxu0 %v658
    %1251 = vmatpush2.bf16.msra.mxu0 %v657
    %1252 = vmatprep.subr.bf16.mxu0 %v654
    %1253 = vmatpush2.bf16.msra.mxu0 %v653
    %1254 = vmatprep.subr.bf16.mxu0 %v650
    %1255 = vmatpush2.bf16.msra.mxu0 %v649
    %1256 = vmatprep.subr.bf16.mxu0 %v646
    %1257 = vmatpush2.bf16.msra.mxu0 %v645
    %1258 = vmatprep.mubr.bf16.mxu0 %v1184
    %1259 = vmatmul.mubr.bf16.gmra.mxu0 %v1183
    %v1260 = vpop.f32.mrf.mxu0
    %v1261 = vadd.f32 %v410, %v1260
    %v1262 = vpop.f32.mrf.mxu0
    %v1263 = vadd.f32 %v414, %v1262
    %v1264 = vpop.f32.mrf.mxu0
    %v1265 = vpop.f32.mrf.mxu0
    %1266 = vdwg.mxu0
    %v1267 = vxor.u32 %v1220, 2147483648
    %v1268 = vxor.u32 %v1222, 2147483648
    %v1269 = vxor.u32 %v1261, 2147483648
    %v1270 = vmul.f32 %v1267, 1.442695
    %v1271 = vpow.pop %v1270
    %v1272 = vmul.f32 %v1268, 1.442695
    %v1273 = vpow.pop %v1272
    %v1274 = vmul.f32 %v1269, 1.442695
    %v1275 = vpow.pop %v1274
    %v1276 = vadd.f32 %v1271, 1.0
    %v1277 = vadd.f32 %v1273, 1.0
    %v1278 = vadd.f32 %v1275, 1.0
    %v1279 = vrcp.pop %v1276
    %v1280 = vmul.f32 1.0, %v1279
    %v1281 = vrcp.pop %v1277
    %v1282 = vmul.f32 1.0, %v1281
    %v1283 = vrcp.pop %v1278
    %v1284 = vmul.f32 1.0, %v1283
    %v1285 = vtanh.pop %v1263
    %v1286 = vmul.f32 %v1282, %v1065
    %v1287 = vmul.f32 %v1280, %v1285
    %v1288 = vadd.f32 %v1286, %v1287
    %v1289 = vtanh.pop %v1288
    %v1290 = vmul.f32 %v1284, %v1289
    %s1291 = scalar_lea.vmem %s0, 96
    %v1292 = vld [vmem:[%s1291] sm:$0xff]
    %v1293 = vld [vmem:[%s1291 + $0x8] sm:$0xff]
    %v1294 = vld [vmem:[%s1291 + $0x10] sm:$0xff]
    %v1295 = vld [vmem:[%s1291 + $0x18] sm:$0xff]
    %1296 = vmatprep.subr.bf16.mxu0 %v251
    %1297 = vmatpush1.bf16.msra.mxu0 %v250
    %1298 = vmatprep.subr.bf16.mxu0 %v247
    %1299 = vmatpush1.bf16.msra.mxu0 %v246
    %1300 = vmatprep.subr.bf16.mxu0 %v243
    %1301 = vmatpush1.bf16.msra.mxu0 %v242
    %1302 = vmatprep.subr.bf16.mxu0 %v239
    %1303 = vmatpush1.bf16.msra.mxu0 %v238
    %1304 = vmatprep.subr.bf16.mxu0 %v235
    %1305 = vmatpush1.bf16.msra.mxu0 %v234
    %1306 = vmatprep.subr.bf16.mxu0 %v231
    %1307 = vmatpush1.bf16.msra.mxu0 %v230
    %1308 = vmatprep.subr.bf16.mxu0 %v227
    %1309 = vmatpush1.bf16.msra.mxu0 %v226
    %1310 = vmatprep.subr.bf16.mxu0 %v223
    %1311 = vmatpush1.bf16.msra.mxu0 %v222
    %1312 = vmatprep.subr.bf16.mxu0 0
    %1313 = vmatpush2.bf16.msra.mxu0 0
    %1314 = vmatprep.subr.bf16.mxu0 0
    %1315 = vmatpush2.bf16.msra.mxu0 0
    %1316 = vmatprep.subr.bf16.mxu0 0
    %1317 = vmatpush2.bf16.msra.mxu0 0
    %1318 = vmatprep.subr.bf16.mxu0 0
    %1319 = vmatpush2.bf16.msra.mxu0 0
    %1320 = vmatprep.subr.bf16.mxu0 0
    %1321 = vmatpush2.bf16.msra.mxu0 0
    %1322 = vmatprep.subr.bf16.mxu0 0
    %1323 = vmatpush2.bf16.msra.mxu0 0
    %1324 = vmatprep.subr.bf16.mxu0 0
    %1325 = vmatpush2.bf16.msra.mxu0 0
    %1326 = vmatprep.subr.bf16.mxu0 0
    %1327 = vmatpush2.bf16.msra.mxu0 0
    %1328 = vmatprep.mubr.bf16.mxu0 0
    %1329 = vmatmul.mubr.bf16.gmra.mxu0 %v1183
    %v1330 = vpop.f32.mrf.mxu0
    %v1331 = vadd.f32 0.0, %v1330
    %v1332 = vpop.f32.mrf.mxu0
    %v1333 = vadd.f32 0.0, %v1332
    %v1334 = vpop.f32.mrf.mxu0
    %v1335 = vpop.f32.mrf.mxu0
    %1336 = vdwg.mxu0
    %1337 = vmatprep.subr.bf16.mxu0 %v253
    %1338 = vmatpush1.bf16.msra.mxu0 %v252
    %1339 = vmatprep.subr.bf16.mxu0 %v249
    %1340 = vmatpush1.bf16.msra.mxu0 %v248
    %1341 = vmatprep.subr.bf16.mxu0 %v245
    %1342 = vmatpush1.bf16.msra.mxu0 %v244
    %1343 = vmatprep.subr.bf16.mxu0 %v241
    %1344 = vmatpush1.bf16.msra.mxu0 %v240
    %1345 = vmatprep.subr.bf16.mxu0 %v237
    %1346 = vmatpush1.bf16.msra.mxu0 %v236
    %1347 = vmatprep.subr.bf16.mxu0 %v233
    %1348 = vmatpush1.bf16.msra.mxu0 %v232
    %1349 = vmatprep.subr.bf16.mxu0 %v229
    %1350 = vmatpush1.bf16.msra.mxu0 %v228
    %1351 = vmatprep.subr.bf16.mxu0 %v225
    %1352 = vmatpush1.bf16.msra.mxu0 %v224
    %1353 = vmatprep.subr.bf16.mxu0 0
    %1354 = vmatpush2.bf16.msra.mxu0 0
    %1355 = vmatprep.subr.bf16.mxu0 0
    %1356 = vmatpush2.bf16.msra.mxu0 0
    %1357 = vmatprep.subr.bf16.mxu0 0
    %1358 = vmatpush2.bf16.msra.mxu0 0
    %1359 = vmatprep.subr.bf16.mxu0 0
    %1360 = vmatpush2.bf16.msra.mxu0 0
    %1361 = vmatprep.subr.bf16.mxu0 0
    %1362 = vmatpush2.bf16.msra.mxu0 0
    %1363 = vmatprep.subr.bf16.mxu0 0
    %1364 = vmatpush2.bf16.msra.mxu0 0
    %1365 = vmatprep.subr.bf16.mxu0 0
    %1366 = vmatpush2.bf16.msra.mxu0 0
    %1367 = vmatprep.subr.bf16.mxu0 0
    %1368 = vmatpush2.bf16.msra.mxu0 0
    %1369 = vmatprep.mubr.bf16.mxu0 0
    %1370 = vmatmul.mubr.bf16.gmra.mxu0 %v1183
    %v1371 = vpop.f32.mrf.mxu0
    %v1372 = vadd.f32 0.0, %v1371
    %v1373 = vpop.f32.mrf.mxu0
    %v1374 = vadd.f32 0.0, %v1373
    %v1375 = vpop.f32.mrf.mxu0
    %v1376 = vpop.f32.mrf.mxu0
    %1377 = vdwg.mxu0
    %v1378 = vadd.f32 %v1292, %v1331
    %v1379 = vadd.f32 %v1293, %v1333
    %v1380 = vadd.f32 %v1294, %v1372
    %v1381 = vadd.f32 %v1295, %v1374
    %v1382 = vxor.u32 %v1378, 2147483648
    %v1383 = vxor.u32 %v1379, 2147483648
    %v1384 = vxor.u32 %v1380, 2147483648
    %v1385 = vmul.f32 %v1382, 1.442695
    %v1386 = vpow.pop %v1385
    %v1387 = vmul.f32 %v1383, 1.442695
    %v1388 = vpow.pop %v1387
    %v1389 = vmul.f32 %v1384, 1.442695
    %v1390 = vpow.pop %v1389
    %v1391 = vadd.f32 %v1386, 1.0
    %v1392 = vadd.f32 %v1388, 1.0
    %v1393 = vadd.f32 %v1390, 1.0
    %v1394 = vrcp.pop %v1391
    %v1395 = vmul.f32 1.0, %v1394
    %v1396 = vrcp.pop %v1392
    %v1397 = vmul.f32 1.0, %v1396
    %v1398 = vrcp.pop %v1393
    %v1399 = vmul.f32 1.0, %v1398
    %v1400 = vtanh.pop %v1381
    %v1401 = vmul.f32 %v1397, %v1180
    %v1402 = vmul.f32 %v1395, %v1400
    %v1403 = vadd.f32 %v1401, %v1402
    %v1404 = vtanh.pop %v1403
    %v1405 = vmul.f32 %v1399, %v1404
    %v1406 = vpack.c.bf16 %v1405, %v1405
    %v1407 = vpack.c.bf16 %v1290, %v1290
    %1408 = vmatprep.subr.bf16.mxu0 %v640
    %1409 = vmatpush1.bf16.msra.mxu0 %v639
    %1410 = vmatprep.subr.bf16.mxu0 %v636
    %1411 = vmatpush1.bf16.msra.mxu0 %v635
    %1412 = vmatprep.subr.bf16.mxu0 %v632
    %1413 = vmatpush1.bf16.msra.mxu0 %v631
    %1414 = vmatprep.subr.bf16.mxu0 %v628
    %1415 = vmatpush1.bf16.msra.mxu0 %v627
    %1416 = vmatprep.subr.bf16.mxu0 %v624
    %1417 = vmatpush1.bf16.msra.mxu0 %v623
    %1418 = vmatprep.subr.bf16.mxu0 %v620
    %1419 = vmatpush1.bf16.msra.mxu0 %v619
    %1420 = vmatprep.subr.bf16.mxu0 %v616
    %1421 = vmatpush1.bf16.msra.mxu0 %v615
    %1422 = vmatprep.subr.bf16.mxu0 %v612
    %1423 = vmatpush1.bf16.msra.mxu0 %v611
    %1424 = vmatprep.subr.bf16.mxu0 %v672
    %1425 = vmatpush2.bf16.msra.mxu0 %v671
    %1426 = vmatprep.subr.bf16.mxu0 %v668
    %1427 = vmatpush2.bf16.msra.mxu0 %v667
    %1428 = vmatprep.subr.bf16.mxu0 %v664
    %1429 = vmatpush2.bf16.msra.mxu0 %v663
    %1430 = vmatprep.subr.bf16.mxu0 %v660
    %1431 = vmatpush2.bf16.msra.mxu0 %v659
    %1432 = vmatprep.subr.bf16.mxu0 %v656
    %1433 = vmatpush2.bf16.msra.mxu0 %v655
    %1434 = vmatprep.subr.bf16.mxu0 %v652
    %1435 = vmatpush2.bf16.msra.mxu0 %v651
    %1436 = vmatprep.subr.bf16.mxu0 %v648
    %1437 = vmatpush2.bf16.msra.mxu0 %v647
    %1438 = vmatprep.subr.bf16.mxu0 %v644
    %1439 = vmatpush2.bf16.msra.mxu0 %v643
    %1440 = vmatprep.mubr.bf16.mxu0 %v1407
    %1441 = vmatmul.mubr.bf16.gmra.mxu0 %v1406
    %v1442 = vpop.f32.mrf.mxu0
    %v1443 = vadd.f32 %v402, %v1442
    %v1444 = vpop.f32.mrf.mxu0
    %v1445 = vadd.f32 %v406, %v1444
    %v1446 = vpop.f32.mrf.mxu0
    %v1447 = vpop.f32.mrf.mxu0
    %1448 = vdwg.mxu0
    %1449 = vmatprep.subr.bf16.mxu0 %v642
    %1450 = vmatpush1.bf16.msra.mxu0 %v641
    %1451 = vmatprep.subr.bf16.mxu0 %v638
    %1452 = vmatpush1.bf16.msra.mxu0 %v637
    %1453 = vmatprep.subr.bf16.mxu0 %v634
    %1454 = vmatpush1.bf16.msra.mxu0 %v633
    %1455 = vmatprep.subr.bf16.mxu0 %v630
    %1456 = vmatpush1.bf16.msra.mxu0 %v629
    %1457 = vmatprep.subr.bf16.mxu0 %v626
    %1458 = vmatpush1.bf16.msra.mxu0 %v625
    %1459 = vmatprep.subr.bf16.mxu0 %v622
    %1460 = vmatpush1.bf16.msra.mxu0 %v621
    %1461 = vmatprep.subr.bf16.mxu0 %v618
    %1462 = vmatpush1.bf16.msra.mxu0 %v617
    %1463 = vmatprep.subr.bf16.mxu0 %v614
    %1464 = vmatpush1.bf16.msra.mxu0 %v613
    %1465 = vmatprep.subr.bf16.mxu0 %v674
    %1466 = vmatpush2.bf16.msra.mxu0 %v673
    %1467 = vmatprep.subr.bf16.mxu0 %v670
    %1468 = vmatpush2.bf16.msra.mxu0 %v669
    %1469 = vmatprep.subr.bf16.mxu0 %v666
    %1470 = vmatpush2.bf16.msra.mxu0 %v665
    %1471 = vmatprep.subr.bf16.mxu0 %v662
    %1472 = vmatpush2.bf16.msra.mxu0 %v661
    %1473 = vmatprep.subr.bf16.mxu0 %v658
    %1474 = vmatpush2.bf16.msra.mxu0 %v657
    %1475 = vmatprep.subr.bf16.mxu0 %v654
    %1476 = vmatpush2.bf16.msra.mxu0 %v653
    %1477 = vmatprep.subr.bf16.mxu0 %v650
    %1478 = vmatpush2.bf16.msra.mxu0 %v649
    %1479 = vmatprep.subr.bf16.mxu0 %v646
    %1480 = vmatpush2.bf16.msra.mxu0 %v645
    %1481 = vmatprep.mubr.bf16.mxu0 %v1407
    %1482 = vmatmul.mubr.bf16.gmra.mxu0 %v1406
    %v1483 = vpop.f32.mrf.mxu0
    %v1484 = vadd.f32 %v410, %v1483
    %v1485 = vpop.f32.mrf.mxu0
    %v1486 = vadd.f32 %v414, %v1485
    %v1487 = vpop.f32.mrf.mxu0
    %v1488 = vpop.f32.mrf.mxu0
    %1489 = vdwg.mxu0
    %v1490 = vxor.u32 %v1443, 2147483648
    %v1491 = vxor.u32 %v1445, 2147483648
    %v1492 = vxor.u32 %v1484, 2147483648
    %v1493 = vmul.f32 %v1490, 1.442695
    %v1494 = vpow.pop %v1493
    %v1495 = vmul.f32 %v1491, 1.442695
    %v1496 = vpow.pop %v1495
    %v1497 = vmul.f32 %v1492, 1.442695
    %v1498 = vpow.pop %v1497
    %v1499 = vadd.f32 %v1494, 1.0
    %v1500 = vadd.f32 %v1496, 1.0
    %v1501 = vadd.f32 %v1498, 1.0
    %v1502 = vrcp.pop %v1499
    %v1503 = vmul.f32 1.0, %v1502
    %v1504 = vrcp.pop %v1500
    %v1505 = vmul.f32 1.0, %v1504
    %v1506 = vrcp.pop %v1501
    %v1507 = vmul.f32 1.0, %v1506
    %v1508 = vtanh.pop %v1486
    %v1509 = vmul.f32 %v1505, %v1288
    %v1510 = vmul.f32 %v1503, %v1508
    %v1511 = vadd.f32 %v1509, %v1510
    %v1512 = vtanh.pop %v1511
    %v1513 = vmul.f32 %v1507, %v1512
    %s1514 = scalar_lea.vmem %s0, 128
    %v1515 = vld [vmem:[%s1514] sm:$0xff]
    %v1516 = vld [vmem:[%s1514 + $0x8] sm:$0xff]
    %v1517 = vld [vmem:[%s1514 + $0x10] sm:$0xff]
    %v1518 = vld [vmem:[%s1514 + $0x18] sm:$0xff]
    %1519 = vmatprep.subr.bf16.mxu0 %v251
    %1520 = vmatpush1.bf16.msra.mxu0 %v250
    %1521 = vmatprep.subr.bf16.mxu0 %v247
    %1522 = vmatpush1.bf16.msra.mxu0 %v246
    %1523 = vmatprep.subr.bf16.mxu0 %v243
    %1524 = vmatpush1.bf16.msra.mxu0 %v242
    %1525 = vmatprep.subr.bf16.mxu0 %v239
    %1526 = vmatpush1.bf16.msra.mxu0 %v238
    %1527 = vmatprep.subr.bf16.mxu0 %v235
    %1528 = vmatpush1.bf16.msra.mxu0 %v234
    %1529 = vmatprep.subr.bf16.mxu0 %v231
    %1530 = vmatpush1.bf16.msra.mxu0 %v230
    %1531 = vmatprep.subr.bf16.mxu0 %v227
    %1532 = vmatpush1.bf16.msra.mxu0 %v226
    %1533 = vmatprep.subr.bf16.mxu0 %v223
    %1534 = vmatpush1.bf16.msra.mxu0 %v222
    %1535 = vmatprep.subr.bf16.mxu0 0
    %1536 = vmatpush2.bf16.msra.mxu0 0
    %1537 = vmatprep.subr.bf16.mxu0 0
    %1538 = vmatpush2.bf16.msra.mxu0 0
    %1539 = vmatprep.subr.bf16.mxu0 0
    %1540 = vmatpush2.bf16.msra.mxu0 0
    %1541 = vmatprep.subr.bf16.mxu0 0
    %1542 = vmatpush2.bf16.msra.mxu0 0
    %1543 = vmatprep.subr.bf16.mxu0 0
    %1544 = vmatpush2.bf16.msra.mxu0 0
    %1545 = vmatprep.subr.bf16.mxu0 0
    %1546 = vmatpush2.bf16.msra.mxu0 0
    %1547 = vmatprep.subr.bf16.mxu0 0
    %1548 = vmatpush2.bf16.msra.mxu0 0
    %1549 = vmatprep.subr.bf16.mxu0 0
    %1550 = vmatpush2.bf16.msra.mxu0 0
    %1551 = vmatprep.mubr.bf16.mxu0 0
    %1552 = vmatmul.mubr.bf16.gmra.mxu0 %v1406
    %v1553 = vpop.f32.mrf.mxu0
    %v1554 = vadd.f32 0.0, %v1553
    %v1555 = vpop.f32.mrf.mxu0
    %v1556 = vadd.f32 0.0, %v1555
    %v1557 = vpop.f32.mrf.mxu0
    %v1558 = vpop.f32.mrf.mxu0
    %1559 = vdwg.mxu0
    %1560 = vmatprep.subr.bf16.mxu0 %v253
    %1561 = vmatpush1.bf16.msra.mxu0 %v252
    %1562 = vmatprep.subr.bf16.mxu0 %v249
    %1563 = vmatpush1.bf16.msra.mxu0 %v248
    %1564 = vmatprep.subr.bf16.mxu0 %v245
    %1565 = vmatpush1.bf16.msra.mxu0 %v244
    %1566 = vmatprep.subr.bf16.mxu0 %v241
    %1567 = vmatpush1.bf16.msra.mxu0 %v240
    %1568 = vmatprep.subr.bf16.mxu0 %v237
    %1569 = vmatpush1.bf16.msra.mxu0 %v236
    %1570 = vmatprep.subr.bf16.mxu0 %v233
    %1571 = vmatpush1.bf16.msra.mxu0 %v232
    %1572 = vmatprep.subr.bf16.mxu0 %v229
    %1573 = vmatpush1.bf16.msra.mxu0 %v228
    %1574 = vmatprep.subr.bf16.mxu0 %v225
    %1575 = vmatpush1.bf16.msra.mxu0 %v224
    %1576 = vmatprep.subr.bf16.mxu0 0
    %1577 = vmatpush2.bf16.msra.mxu0 0
    %1578 = vmatprep.subr.bf16.mxu0 0
    %1579 = vmatpush2.bf16.msra.mxu0 0
    %1580 = vmatprep.subr.bf16.mxu0 0
    %1581 = vmatpush2.bf16.msra.mxu0 0
    %1582 = vmatprep.subr.bf16.mxu0 0
    %1583 = vmatpush2.bf16.msra.mxu0 0
    %1584 = vmatprep.subr.bf16.mxu0 0
    %1585 = vmatpush2.bf16.msra.mxu0 0
    %1586 = vmatprep.subr.bf16.mxu0 0
    %1587 = vmatpush2.bf16.msra.mxu0 0
    %1588 = vmatprep.subr.bf16.mxu0 0
    %1589 = vmatpush2.bf16.msra.mxu0 0
    %1590 = vmatprep.subr.bf16.mxu0 0
    %1591 = vmatpush2.bf16.msra.mxu0 0
    %1592 = vmatprep.mubr.bf16.mxu0 0
    %1593 = vmatmul.mubr.bf16.gmra.mxu0 %v1406
    %v1594 = vpop.f32.mrf.mxu0
    %v1595 = vadd.f32 0.0, %v1594
    %v1596 = vpop.f32.mrf.mxu0
    %v1597 = vadd.f32 0.0, %v1596
    %v1598 = vpop.f32.mrf.mxu0
    %v1599 = vpop.f32.mrf.mxu0
    %1600 = vdwg.mxu0
    %v1601 = vadd.f32 %v1515, %v1554
    %v1602 = vadd.f32 %v1516, %v1556
    %v1603 = vadd.f32 %v1517, %v1595
    %v1604 = vadd.f32 %v1518, %v1597
    %v1605 = vxor.u32 %v1601, 2147483648
    %v1606 = vxor.u32 %v1602, 2147483648
    %v1607 = vxor.u32 %v1603, 2147483648
    %v1608 = vmul.f32 %v1605, 1.442695
    %v1609 = vpow.pop %v1608
    %v1610 = vmul.f32 %v1606, 1.442695
    %v1611 = vpow.pop %v1610
    %v1612 = vmul.f32 %v1607, 1.442695
    %v1613 = vpow.pop %v1612
    %v1614 = vadd.f32 %v1609, 1.0
    %v1615 = vadd.f32 %v1611, 1.0
    %v1616 = vadd.f32 %v1613, 1.0
    %v1617 = vrcp.pop %v1614
    %v1618 = vmul.f32 1.0, %v1617
    %v1619 = vrcp.pop %v1615
    %v1620 = vmul.f32 1.0, %v1619
    %v1621 = vrcp.pop %v1616
    %v1622 = vmul.f32 1.0, %v1621
    %v1623 = vtanh.pop %v1604
    %v1624 = vmul.f32 %v1620, %v1403
    %v1625 = vmul.f32 %v1618, %v1623
    %v1626 = vadd.f32 %v1624, %v1625
    %v1627 = vtanh.pop %v1626
    %v1628 = vmul.f32 %v1622, %v1627
    %v1629 = vpack.c.bf16 %v1628, %v1628
    %v1630 = vpack.c.bf16 %v1513, %v1513
    %1631 = vmatprep.subr.bf16.mxu0 %v640
    %1632 = vmatpush1.bf16.msra.mxu0 %v639
    %1633 = vmatprep.subr.bf16.mxu0 %v636
    %1634 = vmatpush1.bf16.msra.mxu0 %v635
    %1635 = vmatprep.subr.bf16.mxu0 %v632
    %1636 = vmatpush1.bf16.msra.mxu0 %v631
    %1637 = vmatprep.subr.bf16.mxu0 %v628
    %1638 = vmatpush1.bf16.msra.mxu0 %v627
    %1639 = vmatprep.subr.bf16.mxu0 %v624
    %1640 = vmatpush1.bf16.msra.mxu0 %v623
    %1641 = vmatprep.subr.bf16.mxu0 %v620
    %1642 = vmatpush1.bf16.msra.mxu0 %v619
    %1643 = vmatprep.subr.bf16.mxu0 %v616
    %1644 = vmatpush1.bf16.msra.mxu0 %v615
    %1645 = vmatprep.subr.bf16.mxu0 %v612
    %1646 = vmatpush1.bf16.msra.mxu0 %v611
    %1647 = vmatprep.subr.bf16.mxu0 %v672
    %1648 = vmatpush2.bf16.msra.mxu0 %v671
    %1649 = vmatprep.subr.bf16.mxu0 %v668
    %1650 = vmatpush2.bf16.msra.mxu0 %v667
    %1651 = vmatprep.subr.bf16.mxu0 %v664
    %1652 = vmatpush2.bf16.msra.mxu0 %v663
    %1653 = vmatprep.subr.bf16.mxu0 %v660
    %1654 = vmatpush2.bf16.msra.mxu0 %v659
    %1655 = vmatprep.subr.bf16.mxu0 %v656
    %1656 = vmatpush2.bf16.msra.mxu0 %v655
    %1657 = vmatprep.subr.bf16.mxu0 %v652
    %1658 = vmatpush2.bf16.msra.mxu0 %v651
    %1659 = vmatprep.subr.bf16.mxu0 %v648
    %1660 = vmatpush2.bf16.msra.mxu0 %v647
    %1661 = vmatprep.subr.bf16.mxu0 %v644
    %1662 = vmatpush2.bf16.msra.mxu0 %v643
    %1663 = vmatprep.mubr.bf16.mxu0 %v1630
    %1664 = vmatmul.mubr.bf16.gmra.mxu0 %v1629
    %v1665 = vpop.f32.mrf.mxu0
    %v1666 = vadd.f32 %v402, %v1665
    %v1667 = vpop.f32.mrf.mxu0
    %v1668 = vadd.f32 %v406, %v1667
    %v1669 = vpop.f32.mrf.mxu0
    %v1670 = vpop.f32.mrf.mxu0
    %1671 = vdwg.mxu0
    %1672 = vmatprep.subr.bf16.mxu0 %v642
    %1673 = vmatpush1.bf16.msra.mxu0 %v641
    %1674 = vmatprep.subr.bf16.mxu0 %v638
    %1675 = vmatpush1.bf16.msra.mxu0 %v637
    %1676 = vmatprep.subr.bf16.mxu0 %v634
    %1677 = vmatpush1.bf16.msra.mxu0 %v633
    %1678 = vmatprep.subr.bf16.mxu0 %v630
    %1679 = vmatpush1.bf16.msra.mxu0 %v629
    %1680 = vmatprep.subr.bf16.mxu0 %v626
    %1681 = vmatpush1.bf16.msra.mxu0 %v625
    %1682 = vmatprep.subr.bf16.mxu0 %v622
    %1683 = vmatpush1.bf16.msra.mxu0 %v621
    %1684 = vmatprep.subr.bf16.mxu0 %v618
    %1685 = vmatpush1.bf16.msra.mxu0 %v617
    %1686 = vmatprep.subr.bf16.mxu0 %v614
    %1687 = vmatpush1.bf16.msra.mxu0 %v613
    %1688 = vmatprep.subr.bf16.mxu0 %v674
    %1689 = vmatpush2.bf16.msra.mxu0 %v673
    %1690 = vmatprep.subr.bf16.mxu0 %v670
    %1691 = vmatpush2.bf16.msra.mxu0 %v669
    %1692 = vmatprep.subr.bf16.mxu0 %v666
    %1693 = vmatpush2.bf16.msra.mxu0 %v665
    %1694 = vmatprep.subr.bf16.mxu0 %v662
    %1695 = vmatpush2.bf16.msra.mxu0 %v661
    %1696 = vmatprep.subr.bf16.mxu0 %v658
    %1697 = vmatpush2.bf16.msra.mxu0 %v657
    %1698 = vmatprep.subr.bf16.mxu0 %v654
    %1699 = vmatpush2.bf16.msra.mxu0 %v653
    %1700 = vmatprep.subr.bf16.mxu0 %v650
    %1701 = vmatpush2.bf16.msra.mxu0 %v649
    %1702 = vmatprep.subr.bf16.mxu0 %v646
    %1703 = vmatpush2.bf16.msra.mxu0 %v645
    %1704 = vmatprep.mubr.bf16.mxu0 %v1630
    %1705 = vmatmul.mubr.bf16.gmra.mxu0 %v1629
    %v1706 = vpop.f32.mrf.mxu0
    %v1707 = vadd.f32 %v410, %v1706
    %v1708 = vpop.f32.mrf.mxu0
    %v1709 = vadd.f32 %v414, %v1708
    %v1710 = vpop.f32.mrf.mxu0
    %v1711 = vpop.f32.mrf.mxu0
    %1712 = vdwg.mxu0
    %v1713 = vxor.u32 %v1666, 2147483648
    %v1714 = vxor.u32 %v1668, 2147483648
    %v1715 = vxor.u32 %v1707, 2147483648
    %v1716 = vmul.f32 %v1713, 1.442695
    %v1717 = vpow.pop %v1716
    %v1718 = vmul.f32 %v1714, 1.442695
    %v1719 = vpow.pop %v1718
    %v1720 = vmul.f32 %v1715, 1.442695
    %v1721 = vpow.pop %v1720
    %v1722 = vadd.f32 %v1717, 1.0
    %v1723 = vadd.f32 %v1719, 1.0
    %v1724 = vadd.f32 %v1721, 1.0
    %v1725 = vrcp.pop %v1722
    %v1726 = vmul.f32 1.0, %v1725
    %v1727 = vrcp.pop %v1723
    %v1728 = vmul.f32 1.0, %v1727
    %v1729 = vrcp.pop %v1724
    %v1730 = vmul.f32 1.0, %v1729
    %v1731 = vtanh.pop %v1709
    %v1732 = vmul.f32 %v1728, %v1511
    %v1733 = vmul.f32 %v1726, %v1731
    %v1734 = vadd.f32 %v1732, %v1733
    %v1735 = vtanh.pop %v1734
    %v1736 = vmul.f32 %v1730, %v1735
    %s1737 = scalar_lea.vmem %s0, 160
    %v1738 = vld [vmem:[%s1737] sm:$0xff]
    %v1739 = vld [vmem:[%s1737 + $0x8] sm:$0xff]
    %v1740 = vld [vmem:[%s1737 + $0x10] sm:$0xff]
    %v1741 = vld [vmem:[%s1737 + $0x18] sm:$0xff]
    %1742 = vmatprep.subr.bf16.mxu0 %v251
    %1743 = vmatpush1.bf16.msra.mxu0 %v250
    %1744 = vmatprep.subr.bf16.mxu0 %v247
    %1745 = vmatpush1.bf16.msra.mxu0 %v246
    %1746 = vmatprep.subr.bf16.mxu0 %v243
    %1747 = vmatpush1.bf16.msra.mxu0 %v242
    %1748 = vmatprep.subr.bf16.mxu0 %v239
    %1749 = vmatpush1.bf16.msra.mxu0 %v238
    %1750 = vmatprep.subr.bf16.mxu0 %v235
    %1751 = vmatpush1.bf16.msra.mxu0 %v234
    %1752 = vmatprep.subr.bf16.mxu0 %v231
    %1753 = vmatpush1.bf16.msra.mxu0 %v230
    %1754 = vmatprep.subr.bf16.mxu0 %v227
    %1755 = vmatpush1.bf16.msra.mxu0 %v226
    %1756 = vmatprep.subr.bf16.mxu0 %v223
    %1757 = vmatpush1.bf16.msra.mxu0 %v222
    %1758 = vmatprep.subr.bf16.mxu0 0
    %1759 = vmatpush2.bf16.msra.mxu0 0
    %1760 = vmatprep.subr.bf16.mxu0 0
    %1761 = vmatpush2.bf16.msra.mxu0 0
    %1762 = vmatprep.subr.bf16.mxu0 0
    %1763 = vmatpush2.bf16.msra.mxu0 0
    %1764 = vmatprep.subr.bf16.mxu0 0
    %1765 = vmatpush2.bf16.msra.mxu0 0
    %1766 = vmatprep.subr.bf16.mxu0 0
    %1767 = vmatpush2.bf16.msra.mxu0 0
    %1768 = vmatprep.subr.bf16.mxu0 0
    %1769 = vmatpush2.bf16.msra.mxu0 0
    %1770 = vmatprep.subr.bf16.mxu0 0
    %1771 = vmatpush2.bf16.msra.mxu0 0
    %1772 = vmatprep.subr.bf16.mxu0 0
    %1773 = vmatpush2.bf16.msra.mxu0 0
    %1774 = vmatprep.mubr.bf16.mxu0 0
    %1775 = vmatmul.mubr.bf16.gmra.mxu0 %v1629
    %v1776 = vpop.f32.mrf.mxu0
    %v1777 = vadd.f32 0.0, %v1776
    %v1778 = vpop.f32.mrf.mxu0
    %v1779 = vadd.f32 0.0, %v1778
    %v1780 = vpop.f32.mrf.mxu0
    %v1781 = vpop.f32.mrf.mxu0
    %1782 = vdwg.mxu0
    %1783 = vmatprep.subr.bf16.mxu0 %v253
    %1784 = vmatpush1.bf16.msra.mxu0 %v252
    %1785 = vmatprep.subr.bf16.mxu0 %v249
    %1786 = vmatpush1.bf16.msra.mxu0 %v248
    %1787 = vmatprep.subr.bf16.mxu0 %v245
    %1788 = vmatpush1.bf16.msra.mxu0 %v244
    %1789 = vmatprep.subr.bf16.mxu0 %v241
    %1790 = vmatpush1.bf16.msra.mxu0 %v240
    %1791 = vmatprep.subr.bf16.mxu0 %v237
    %1792 = vmatpush1.bf16.msra.mxu0 %v236
    %1793 = vmatprep.subr.bf16.mxu0 %v233
    %1794 = vmatpush1.bf16.msra.mxu0 %v232
    %1795 = vmatprep.subr.bf16.mxu0 %v229
    %1796 = vmatpush1.bf16.msra.mxu0 %v228
    %1797 = vmatprep.subr.bf16.mxu0 %v225
    %1798 = vmatpush1.bf16.msra.mxu0 %v224
    %1799 = vmatprep.subr.bf16.mxu0 0
    %1800 = vmatpush2.bf16.msra.mxu0 0
    %1801 = vmatprep.subr.bf16.mxu0 0
    %1802 = vmatpush2.bf16.msra.mxu0 0
    %1803 = vmatprep.subr.bf16.mxu0 0
    %1804 = vmatpush2.bf16.msra.mxu0 0
    %1805 = vmatprep.subr.bf16.mxu0 0
    %1806 = vmatpush2.bf16.msra.mxu0 0
    %1807 = vmatprep.subr.bf16.mxu0 0
    %1808 = vmatpush2.bf16.msra.mxu0 0
    %1809 = vmatprep.subr.bf16.mxu0 0
    %1810 = vmatpush2.bf16.msra.mxu0 0
    %1811 = vmatprep.subr.bf16.mxu0 0
    %1812 = vmatpush2.bf16.msra.mxu0 0
    %1813 = vmatprep.subr.bf16.mxu0 0
    %1814 = vmatpush2.bf16.msra.mxu0 0
    %1815 = vmatprep.mubr.bf16.mxu0 0
    %1816 = vmatmul.mubr.bf16.gmra.mxu0 %v1629
    %v1817 = vpop.f32.mrf.mxu0
    %v1818 = vadd.f32 0.0, %v1817
    %v1819 = vpop.f32.mrf.mxu0
    %v1820 = vadd.f32 0.0, %v1819
    %v1821 = vpop.f32.mrf.mxu0
    %v1822 = vpop.f32.mrf.mxu0
    %1823 = vdwg.mxu0
    %v1824 = vadd.f32 %v1738, %v1777
    %v1825 = vadd.f32 %v1739, %v1779
    %v1826 = vadd.f32 %v1740, %v1818
    %v1827 = vadd.f32 %v1741, %v1820
    %v1828 = vxor.u32 %v1824, 2147483648
    %v1829 = vxor.u32 %v1825, 2147483648
    %v1830 = vxor.u32 %v1826, 2147483648
    %v1831 = vmul.f32 %v1828, 1.442695
    %v1832 = vpow.pop %v1831
    %v1833 = vmul.f32 %v1829, 1.442695
    %v1834 = vpow.pop %v1833
    %v1835 = vmul.f32 %v1830, 1.442695
    %v1836 = vpow.pop %v1835
    %v1837 = vadd.f32 %v1832, 1.0
    %v1838 = vadd.f32 %v1834, 1.0
    %v1839 = vadd.f32 %v1836, 1.0
    %v1840 = vrcp.pop %v1837
    %v1841 = vmul.f32 1.0, %v1840
    %v1842 = vrcp.pop %v1838
    %v1843 = vmul.f32 1.0, %v1842
    %v1844 = vrcp.pop %v1839
    %v1845 = vmul.f32 1.0, %v1844
    %v1846 = vtanh.pop %v1827
    %v1847 = vmul.f32 %v1843, %v1626
    %v1848 = vmul.f32 %v1841, %v1846
    %v1849 = vadd.f32 %v1847, %v1848
    %v1850 = vtanh.pop %v1849
    %v1851 = vmul.f32 %v1845, %v1850
    %v1852 = vpack.c.bf16 %v1851, %v1851
    %v1853 = vpack.c.bf16 %v1736, %v1736
    %1854 = vmatprep.subr.bf16.mxu0 %v640
    %1855 = vmatpush1.bf16.msra.mxu0 %v639
    %1856 = vmatprep.subr.bf16.mxu0 %v636
    %1857 = vmatpush1.bf16.msra.mxu0 %v635
    %1858 = vmatprep.subr.bf16.mxu0 %v632
    %1859 = vmatpush1.bf16.msra.mxu0 %v631
    %1860 = vmatprep.subr.bf16.mxu0 %v628
    %1861 = vmatpush1.bf16.msra.mxu0 %v627
    %1862 = vmatprep.subr.bf16.mxu0 %v624
    %1863 = vmatpush1.bf16.msra.mxu0 %v623
    %1864 = vmatprep.subr.bf16.mxu0 %v620
    %1865 = vmatpush1.bf16.msra.mxu0 %v619
    %1866 = vmatprep.subr.bf16.mxu0 %v616
    %1867 = vmatpush1.bf16.msra.mxu0 %v615
    %1868 = vmatprep.subr.bf16.mxu0 %v612
    %1869 = vmatpush1.bf16.msra.mxu0 %v611
    %1870 = vmatprep.subr.bf16.mxu0 %v672
    %1871 = vmatpush2.bf16.msra.mxu0 %v671
    %1872 = vmatprep.subr.bf16.mxu0 %v668
    %1873 = vmatpush2.bf16.msra.mxu0 %v667
    %1874 = vmatprep.subr.bf16.mxu0 %v664
    %1875 = vmatpush2.bf16.msra.mxu0 %v663
    %1876 = vmatprep.subr.bf16.mxu0 %v660
    %1877 = vmatpush2.bf16.msra.mxu0 %v659
    %1878 = vmatprep.subr.bf16.mxu0 %v656
    %1879 = vmatpush2.bf16.msra.mxu0 %v655
    %1880 = vmatprep.subr.bf16.mxu0 %v652
    %1881 = vmatpush2.bf16.msra.mxu0 %v651
    %1882 = vmatprep.subr.bf16.mxu0 %v648
    %1883 = vmatpush2.bf16.msra.mxu0 %v647
    %1884 = vmatprep.subr.bf16.mxu0 %v644
    %1885 = vmatpush2.bf16.msra.mxu0 %v643
    %1886 = vmatprep.mubr.bf16.mxu0 %v1853
    %1887 = vmatmul.mubr.bf16.gmra.mxu0 %v1852
    %v1888 = vpop.f32.mrf.mxu0
    %v1889 = vadd.f32 %v402, %v1888
    %v1890 = vpop.f32.mrf.mxu0
    %v1891 = vadd.f32 %v406, %v1890
    %v1892 = vpop.f32.mrf.mxu0
    %v1893 = vpop.f32.mrf.mxu0
    %1894 = vdwg.mxu0
    %1895 = vmatprep.subr.bf16.mxu0 %v642
    %1896 = vmatpush1.bf16.msra.mxu0 %v641
    %1897 = vmatprep.subr.bf16.mxu0 %v638
    %1898 = vmatpush1.bf16.msra.mxu0 %v637
    %1899 = vmatprep.subr.bf16.mxu0 %v634
    %1900 = vmatpush1.bf16.msra.mxu0 %v633
    %1901 = vmatprep.subr.bf16.mxu0 %v630
    %1902 = vmatpush1.bf16.msra.mxu0 %v629
    %1903 = vmatprep.subr.bf16.mxu0 %v626
    %1904 = vmatpush1.bf16.msra.mxu0 %v625
    %1905 = vmatprep.subr.bf16.mxu0 %v622
    %1906 = vmatpush1.bf16.msra.mxu0 %v621
    %1907 = vmatprep.subr.bf16.mxu0 %v618
    %1908 = vmatpush1.bf16.msra.mxu0 %v617
    %1909 = vmatprep.subr.bf16.mxu0 %v614
    %1910 = vmatpush1.bf16.msra.mxu0 %v613
    %1911 = vmatprep.subr.bf16.mxu0 %v674
    %1912 = vmatpush2.bf16.msra.mxu0 %v673
    %1913 = vmatprep.subr.bf16.mxu0 %v670
    %1914 = vmatpush2.bf16.msra.mxu0 %v669
    %1915 = vmatprep.subr.bf16.mxu0 %v666
    %1916 = vmatpush2.bf16.msra.mxu0 %v665
    %1917 = vmatprep.subr.bf16.mxu0 %v662
    %1918 = vmatpush2.bf16.msra.mxu0 %v661
    %1919 = vmatprep.subr.bf16.mxu0 %v658
    %1920 = vmatpush2.bf16.msra.mxu0 %v657
    %1921 = vmatprep.subr.bf16.mxu0 %v654
    %1922 = vmatpush2.bf16.msra.mxu0 %v653
    %1923 = vmatprep.subr.bf16.mxu0 %v650
    %1924 = vmatpush2.bf16.msra.mxu0 %v649
    %1925 = vmatprep.subr.bf16.mxu0 %v646
    %1926 = vmatpush2.bf16.msra.mxu0 %v645
    %1927 = vmatprep.mubr.bf16.mxu0 %v1853
    %1928 = vmatmul.mubr.bf16.gmra.mxu0 %v1852
    %v1929 = vpop.f32.mrf.mxu0
    %v1930 = vadd.f32 %v410, %v1929
    %v1931 = vpop.f32.mrf.mxu0
    %v1932 = vadd.f32 %v414, %v1931
    %v1933 = vpop.f32.mrf.mxu0
    %v1934 = vpop.f32.mrf.mxu0
    %1935 = vdwg.mxu0
    %v1936 = vxor.u32 %v1889, 2147483648
    %v1937 = vxor.u32 %v1891, 2147483648
    %v1938 = vxor.u32 %v1930, 2147483648
    %v1939 = vmul.f32 %v1936, 1.442695
    %v1940 = vpow.pop %v1939
    %v1941 = vmul.f32 %v1937, 1.442695
    %v1942 = vpow.pop %v1941
    %v1943 = vmul.f32 %v1938, 1.442695
    %v1944 = vpow.pop %v1943
    %v1945 = vadd.f32 %v1940, 1.0
    %v1946 = vadd.f32 %v1942, 1.0
    %v1947 = vadd.f32 %v1944, 1.0
    %v1948 = vrcp.pop %v1945
    %v1949 = vmul.f32 1.0, %v1948
    %v1950 = vrcp.pop %v1946
    %v1951 = vmul.f32 1.0, %v1950
    %v1952 = vrcp.pop %v1947
    %v1953 = vmul.f32 1.0, %v1952
    %v1954 = vtanh.pop %v1932
    %v1955 = vmul.f32 %v1951, %v1734
    %v1956 = vmul.f32 %v1949, %v1954
    %v1957 = vadd.f32 %v1955, %v1956
    %v1958 = vtanh.pop %v1957
    %v1959 = vmul.f32 %v1953, %v1958
    %s1960 = scalar_lea.vmem %s0, 192
    %v1961 = vld [vmem:[%s1960] sm:$0xff]
    %v1962 = vld [vmem:[%s1960 + $0x8] sm:$0xff]
    %v1963 = vld [vmem:[%s1960 + $0x10] sm:$0xff]
    %v1964 = vld [vmem:[%s1960 + $0x18] sm:$0xff]
    %1965 = vmatprep.subr.bf16.mxu0 %v251
    %1966 = vmatpush1.bf16.msra.mxu0 %v250
    %1967 = vmatprep.subr.bf16.mxu0 %v247
    %1968 = vmatpush1.bf16.msra.mxu0 %v246
    %1969 = vmatprep.subr.bf16.mxu0 %v243
    %1970 = vmatpush1.bf16.msra.mxu0 %v242
    %1971 = vmatprep.subr.bf16.mxu0 %v239
    %1972 = vmatpush1.bf16.msra.mxu0 %v238
    %1973 = vmatprep.subr.bf16.mxu0 %v235
    %1974 = vmatpush1.bf16.msra.mxu0 %v234
    %1975 = vmatprep.subr.bf16.mxu0 %v231
    %1976 = vmatpush1.bf16.msra.mxu0 %v230
    %1977 = vmatprep.subr.bf16.mxu0 %v227
    %1978 = vmatpush1.bf16.msra.mxu0 %v226
    %1979 = vmatprep.subr.bf16.mxu0 %v223
    %1980 = vmatpush1.bf16.msra.mxu0 %v222
    %1981 = vmatprep.subr.bf16.mxu0 0
    %1982 = vmatpush2.bf16.msra.mxu0 0
    %1983 = vmatprep.subr.bf16.mxu0 0
    %1984 = vmatpush2.bf16.msra.mxu0 0
    %1985 = vmatprep.subr.bf16.mxu0 0
    %1986 = vmatpush2.bf16.msra.mxu0 0
    %1987 = vmatprep.subr.bf16.mxu0 0
    %1988 = vmatpush2.bf16.msra.mxu0 0
    %1989 = vmatprep.subr.bf16.mxu0 0
    %1990 = vmatpush2.bf16.msra.mxu0 0
    %1991 = vmatprep.subr.bf16.mxu0 0
    %1992 = vmatpush2.bf16.msra.mxu0 0
    %1993 = vmatprep.subr.bf16.mxu0 0
    %1994 = vmatpush2.bf16.msra.mxu0 0
    %1995 = vmatprep.subr.bf16.mxu0 0
    %1996 = vmatpush2.bf16.msra.mxu0 0
    %1997 = vmatprep.mubr.bf16.mxu0 0
    %1998 = vmatmul.mubr.bf16.gmra.mxu0 %v1852
    %v1999 = vpop.f32.mrf.mxu0
    %v2000 = vadd.f32 0.0, %v1999
    %v2001 = vpop.f32.mrf.mxu0
    %v2002 = vadd.f32 0.0, %v2001
    %v2003 = vpop.f32.mrf.mxu0
    %v2004 = vpop.f32.mrf.mxu0
    %2005 = vdwg.mxu0
    %2006 = vmatprep.subr.bf16.mxu0 %v253
    %2007 = vmatpush1.bf16.msra.mxu0 %v252
    %2008 = vmatprep.subr.bf16.mxu0 %v249
    %2009 = vmatpush1.bf16.msra.mxu0 %v248
    %2010 = vmatprep.subr.bf16.mxu0 %v245
    %2011 = vmatpush1.bf16.msra.mxu0 %v244
    %2012 = vmatprep.subr.bf16.mxu0 %v241
    %2013 = vmatpush1.bf16.msra.mxu0 %v240
    %2014 = vmatprep.subr.bf16.mxu0 %v237
    %2015 = vmatpush1.bf16.msra.mxu0 %v236
    %2016 = vmatprep.subr.bf16.mxu0 %v233
    %2017 = vmatpush1.bf16.msra.mxu0 %v232
    %2018 = vmatprep.subr.bf16.mxu0 %v229
    %2019 = vmatpush1.bf16.msra.mxu0 %v228
    %2020 = vmatprep.subr.bf16.mxu0 %v225
    %2021 = vmatpush1.bf16.msra.mxu0 %v224
    %2022 = vmatprep.subr.bf16.mxu0 0
    %2023 = vmatpush2.bf16.msra.mxu0 0
    %2024 = vmatprep.subr.bf16.mxu0 0
    %2025 = vmatpush2.bf16.msra.mxu0 0
    %2026 = vmatprep.subr.bf16.mxu0 0
    %2027 = vmatpush2.bf16.msra.mxu0 0
    %2028 = vmatprep.subr.bf16.mxu0 0
    %2029 = vmatpush2.bf16.msra.mxu0 0
    %2030 = vmatprep.subr.bf16.mxu0 0
    %2031 = vmatpush2.bf16.msra.mxu0 0
    %2032 = vmatprep.subr.bf16.mxu0 0
    %2033 = vmatpush2.bf16.msra.mxu0 0
    %2034 = vmatprep.subr.bf16.mxu0 0
    %2035 = vmatpush2.bf16.msra.mxu0 0
    %2036 = vmatprep.subr.bf16.mxu0 0
    %2037 = vmatpush2.bf16.msra.mxu0 0
    %2038 = vmatprep.mubr.bf16.mxu0 0
    %2039 = vmatmul.mubr.bf16.gmra.mxu0 %v1852
    %v2040 = vpop.f32.mrf.mxu0
    %v2041 = vadd.f32 0.0, %v2040
    %v2042 = vpop.f32.mrf.mxu0
    %v2043 = vadd.f32 0.0, %v2042
    %v2044 = vpop.f32.mrf.mxu0
    %v2045 = vpop.f32.mrf.mxu0
    %2046 = vdwg.mxu0
    %v2047 = vadd.f32 %v1961, %v2000
    %v2048 = vadd.f32 %v1962, %v2002
    %v2049 = vadd.f32 %v1963, %v2041
    %v2050 = vadd.f32 %v1964, %v2043
    %v2051 = vxor.u32 %v2047, 2147483648
    %v2052 = vxor.u32 %v2048, 2147483648
    %v2053 = vxor.u32 %v2049, 2147483648
    %v2054 = vmul.f32 %v2051, 1.442695
    %v2055 = vpow.pop %v2054
    %v2056 = vmul.f32 %v2052, 1.442695
    %v2057 = vpow.pop %v2056
    %v2058 = vmul.f32 %v2053, 1.442695
    %v2059 = vpow.pop %v2058
    %v2060 = vadd.f32 %v2055, 1.0
    %v2061 = vadd.f32 %v2057, 1.0
    %v2062 = vadd.f32 %v2059, 1.0
    %v2063 = vrcp.pop %v2060
    %v2064 = vmul.f32 1.0, %v2063
    %v2065 = vrcp.pop %v2061
    %v2066 = vmul.f32 1.0, %v2065
    %v2067 = vrcp.pop %v2062
    %v2068 = vmul.f32 1.0, %v2067
    %v2069 = vtanh.pop %v2050
    %v2070 = vmul.f32 %v2066, %v1849
    %v2071 = vmul.f32 %v2064, %v2069
    %v2072 = vadd.f32 %v2070, %v2071
    %v2073 = vtanh.pop %v2072
    %v2074 = vmul.f32 %v2068, %v2073
    %v2075 = vpack.c.bf16 %v2074, %v2074
    %v2076 = vpack.c.bf16 %v1959, %v1959
    %2077 = vmatprep.subr.bf16.mxu0 %v640
    %2078 = vmatpush1.bf16.msra.mxu0 %v639
    %2079 = vmatprep.subr.bf16.mxu0 %v636
    %2080 = vmatpush1.bf16.msra.mxu0 %v635
    %2081 = vmatprep.subr.bf16.mxu0 %v632
    %2082 = vmatpush1.bf16.msra.mxu0 %v631
    %2083 = vmatprep.subr.bf16.mxu0 %v628
    %2084 = vmatpush1.bf16.msra.mxu0 %v627
    %2085 = vmatprep.subr.bf16.mxu0 %v624
    %2086 = vmatpush1.bf16.msra.mxu0 %v623
    %2087 = vmatprep.subr.bf16.mxu0 %v620
    %2088 = vmatpush1.bf16.msra.mxu0 %v619
    %2089 = vmatprep.subr.bf16.mxu0 %v616
    %2090 = vmatpush1.bf16.msra.mxu0 %v615
    %2091 = vmatprep.subr.bf16.mxu0 %v612
    %2092 = vmatpush1.bf16.msra.mxu0 %v611
    %2093 = vmatprep.subr.bf16.mxu0 %v672
    %2094 = vmatpush2.bf16.msra.mxu0 %v671
    %2095 = vmatprep.subr.bf16.mxu0 %v668
    %2096 = vmatpush2.bf16.msra.mxu0 %v667
    %2097 = vmatprep.subr.bf16.mxu0 %v664
    %2098 = vmatpush2.bf16.msra.mxu0 %v663
    %2099 = vmatprep.subr.bf16.mxu0 %v660
    %2100 = vmatpush2.bf16.msra.mxu0 %v659
    %2101 = vmatprep.subr.bf16.mxu0 %v656
    %2102 = vmatpush2.bf16.msra.mxu0 %v655
    %2103 = vmatprep.subr.bf16.mxu0 %v652
    %2104 = vmatpush2.bf16.msra.mxu0 %v651
    %2105 = vmatprep.subr.bf16.mxu0 %v648
    %2106 = vmatpush2.bf16.msra.mxu0 %v647
    %2107 = vmatprep.subr.bf16.mxu0 %v644
    %2108 = vmatpush2.bf16.msra.mxu0 %v643
    %2109 = vmatprep.mubr.bf16.mxu0 %v2076
    %2110 = vmatmul.mubr.bf16.gmra.mxu0 %v2075
    %v2111 = vpop.f32.mrf.mxu0
    %v2112 = vadd.f32 %v402, %v2111
    %v2113 = vpop.f32.mrf.mxu0
    %v2114 = vadd.f32 %v406, %v2113
    %v2115 = vpop.f32.mrf.mxu0
    %v2116 = vpop.f32.mrf.mxu0
    %2117 = vdwg.mxu0
    %2118 = vmatprep.subr.bf16.mxu0 %v642
    %2119 = vmatpush1.bf16.msra.mxu0 %v641
    %2120 = vmatprep.subr.bf16.mxu0 %v638
    %2121 = vmatpush1.bf16.msra.mxu0 %v637
    %2122 = vmatprep.subr.bf16.mxu0 %v634
    %2123 = vmatpush1.bf16.msra.mxu0 %v633
    %2124 = vmatprep.subr.bf16.mxu0 %v630
    %2125 = vmatpush1.bf16.msra.mxu0 %v629
    %2126 = vmatprep.subr.bf16.mxu0 %v626
    %2127 = vmatpush1.bf16.msra.mxu0 %v625
    %2128 = vmatprep.subr.bf16.mxu0 %v622
    %2129 = vmatpush1.bf16.msra.mxu0 %v621
    %2130 = vmatprep.subr.bf16.mxu0 %v618
    %2131 = vmatpush1.bf16.msra.mxu0 %v617
    %2132 = vmatprep.subr.bf16.mxu0 %v614
    %2133 = vmatpush1.bf16.msra.mxu0 %v613
    %2134 = vmatprep.subr.bf16.mxu0 %v674
    %2135 = vmatpush2.bf16.msra.mxu0 %v673
    %2136 = vmatprep.subr.bf16.mxu0 %v670
    %2137 = vmatpush2.bf16.msra.mxu0 %v669
    %2138 = vmatprep.subr.bf16.mxu0 %v666
    %2139 = vmatpush2.bf16.msra.mxu0 %v665
    %2140 = vmatprep.subr.bf16.mxu0 %v662
    %2141 = vmatpush2.bf16.msra.mxu0 %v661
    %2142 = vmatprep.subr.bf16.mxu0 %v658
    %2143 = vmatpush2.bf16.msra.mxu0 %v657
    %2144 = vmatprep.subr.bf16.mxu0 %v654
    %2145 = vmatpush2.bf16.msra.mxu0 %v653
    %2146 = vmatprep.subr.bf16.mxu0 %v650
    %2147 = vmatpush2.bf16.msra.mxu0 %v649
    %2148 = vmatprep.subr.bf16.mxu0 %v646
    %2149 = vmatpush2.bf16.msra.mxu0 %v645
    %2150 = vmatprep.mubr.bf16.mxu0 %v2076
    %2151 = vmatmul.mubr.bf16.gmra.mxu0 %v2075
    %v2152 = vpop.f32.mrf.mxu0
    %v2153 = vadd.f32 %v410, %v2152
    %v2154 = vpop.f32.mrf.mxu0
    %v2155 = vadd.f32 %v414, %v2154
    %v2156 = vpop.f32.mrf.mxu0
    %v2157 = vpop.f32.mrf.mxu0
    %2158 = vdwg.mxu0
    %v2159 = vxor.u32 %v2112, 2147483648
    %v2160 = vxor.u32 %v2114, 2147483648
    %v2161 = vxor.u32 %v2153, 2147483648
    %v2162 = vmul.f32 %v2159, 1.442695
    %v2163 = vpow.pop %v2162
    %v2164 = vmul.f32 %v2160, 1.442695
    %v2165 = vpow.pop %v2164
    %v2166 = vmul.f32 %v2161, 1.442695
    %v2167 = vpow.pop %v2166
    %v2168 = vadd.f32 %v2163, 1.0
    %v2169 = vadd.f32 %v2165, 1.0
    %v2170 = vadd.f32 %v2167, 1.0
    %v2171 = vrcp.pop %v2168
    %v2172 = vmul.f32 1.0, %v2171
    %v2173 = vrcp.pop %v2169
    %v2174 = vmul.f32 1.0, %v2173
    %v2175 = vrcp.pop %v2170
    %v2176 = vmul.f32 1.0, %v2175
    %v2177 = vtanh.pop %v2155
    %v2178 = vmul.f32 %v2174, %v1957
    %v2179 = vmul.f32 %v2172, %v2177
    %v2180 = vadd.f32 %v2178, %v2179
    %v2181 = vtanh.pop %v2180
    %v2182 = vmul.f32 %v2176, %v2181
    %s2183 = scalar_lea.vmem %s0, 224
    %v2184 = vld [vmem:[%s2183] sm:$0xff]
    %v2185 = vld [vmem:[%s2183 + $0x8] sm:$0xff]
    %v2186 = vld [vmem:[%s2183 + $0x10] sm:$0xff]
    %v2187 = vld [vmem:[%s2183 + $0x18] sm:$0xff]
    %2188 = vmatprep.subr.bf16.mxu0 %v251
    %2189 = vmatpush1.bf16.msra.mxu0 %v250
    %2190 = vmatprep.subr.bf16.mxu0 %v247
    %2191 = vmatpush1.bf16.msra.mxu0 %v246
    %2192 = vmatprep.subr.bf16.mxu0 %v243
    %2193 = vmatpush1.bf16.msra.mxu0 %v242
    %2194 = vmatprep.subr.bf16.mxu0 %v239
    %2195 = vmatpush1.bf16.msra.mxu0 %v238
    %2196 = vmatprep.subr.bf16.mxu0 %v235
    %2197 = vmatpush1.bf16.msra.mxu0 %v234
    %2198 = vmatprep.subr.bf16.mxu0 %v231
    %2199 = vmatpush1.bf16.msra.mxu0 %v230
    %2200 = vmatprep.subr.bf16.mxu0 %v227
    %2201 = vmatpush1.bf16.msra.mxu0 %v226
    %2202 = vmatprep.subr.bf16.mxu0 %v223
    %2203 = vmatpush1.bf16.msra.mxu0 %v222
    %2204 = vmatprep.subr.bf16.mxu0 0
    %2205 = vmatpush2.bf16.msra.mxu0 0
    %2206 = vmatprep.subr.bf16.mxu0 0
    %2207 = vmatpush2.bf16.msra.mxu0 0
    %2208 = vmatprep.subr.bf16.mxu0 0
    %2209 = vmatpush2.bf16.msra.mxu0 0
    %2210 = vmatprep.subr.bf16.mxu0 0
    %2211 = vmatpush2.bf16.msra.mxu0 0
    %2212 = vmatprep.subr.bf16.mxu0 0
    %2213 = vmatpush2.bf16.msra.mxu0 0
    %2214 = vmatprep.subr.bf16.mxu0 0
    %2215 = vmatpush2.bf16.msra.mxu0 0
    %2216 = vmatprep.subr.bf16.mxu0 0
    %2217 = vmatpush2.bf16.msra.mxu0 0
    %2218 = vmatprep.subr.bf16.mxu0 0
    %2219 = vmatpush2.bf16.msra.mxu0 0
    %2220 = vmatprep.mubr.bf16.mxu0 0
    %2221 = vmatmul.mubr.bf16.gmra.mxu0 %v2075
    %v2222 = vpop.f32.mrf.mxu0
    %v2223 = vadd.f32 0.0, %v2222
    %v2224 = vpop.f32.mrf.mxu0
    %v2225 = vadd.f32 0.0, %v2224
    %v2226 = vpop.f32.mrf.mxu0
    %v2227 = vpop.f32.mrf.mxu0
    %2228 = vdwg.mxu0
    %2229 = vmatprep.subr.bf16.mxu0 %v253
    %2230 = vmatpush1.bf16.msra.mxu0 %v252
    %2231 = vmatprep.subr.bf16.mxu0 %v249
    %2232 = vmatpush1.bf16.msra.mxu0 %v248
    %2233 = vmatprep.subr.bf16.mxu0 %v245
    %2234 = vmatpush1.bf16.msra.mxu0 %v244
    %2235 = vmatprep.subr.bf16.mxu0 %v241
    %2236 = vmatpush1.bf16.msra.mxu0 %v240
    %2237 = vmatprep.subr.bf16.mxu0 %v237
    %2238 = vmatpush1.bf16.msra.mxu0 %v236
    %2239 = vmatprep.subr.bf16.mxu0 %v233
    %2240 = vmatpush1.bf16.msra.mxu0 %v232
    %2241 = vmatprep.subr.bf16.mxu0 %v229
    %2242 = vmatpush1.bf16.msra.mxu0 %v228
    %2243 = vmatprep.subr.bf16.mxu0 %v225
    %2244 = vmatpush1.bf16.msra.mxu0 %v224
    %2245 = vmatprep.subr.bf16.mxu0 0
    %2246 = vmatpush2.bf16.msra.mxu0 0
    %2247 = vmatprep.subr.bf16.mxu0 0
    %2248 = vmatpush2.bf16.msra.mxu0 0
    %2249 = vmatprep.subr.bf16.mxu0 0
    %2250 = vmatpush2.bf16.msra.mxu0 0
    %2251 = vmatprep.subr.bf16.mxu0 0
    %2252 = vmatpush2.bf16.msra.mxu0 0
    %2253 = vmatprep.subr.bf16.mxu0 0
    %2254 = vmatpush2.bf16.msra.mxu0 0
    %2255 = vmatprep.subr.bf16.mxu0 0
    %2256 = vmatpush2.bf16.msra.mxu0 0
    %2257 = vmatprep.subr.bf16.mxu0 0
    %2258 = vmatpush2.bf16.msra.mxu0 0
    %2259 = vmatprep.subr.bf16.mxu0 0
    %2260 = vmatpush2.bf16.msra.mxu0 0
    %2261 = vmatprep.mubr.bf16.mxu0 0
    %2262 = vmatmul.mubr.bf16.gmra.mxu0 %v2075
    %v2263 = vpop.f32.mrf.mxu0
    %v2264 = vadd.f32 0.0, %v2263
    %v2265 = vpop.f32.mrf.mxu0
    %v2266 = vadd.f32 0.0, %v2265
    %v2267 = vpop.f32.mrf.mxu0
    %v2268 = vpop.f32.mrf.mxu0
    %2269 = vdwg.mxu0
    %v2270 = vadd.f32 %v2184, %v2223
    %v2271 = vadd.f32 %v2185, %v2225
    %v2272 = vadd.f32 %v2186, %v2264
    %v2273 = vadd.f32 %v2187, %v2266
    %v2274 = vxor.u32 %v2270, 2147483648
    %v2275 = vxor.u32 %v2271, 2147483648
    %v2276 = vxor.u32 %v2272, 2147483648
    %v2277 = vmul.f32 %v2274, 1.442695
    %v2278 = vpow.pop %v2277
    %v2279 = vmul.f32 %v2275, 1.442695
    %v2280 = vpow.pop %v2279
    %v2281 = vmul.f32 %v2276, 1.442695
    %v2282 = vpow.pop %v2281
    %v2283 = vadd.f32 %v2278, 1.0
    %v2284 = vadd.f32 %v2280, 1.0
    %v2285 = vadd.f32 %v2282, 1.0
    %v2286 = vrcp.pop %v2283
    %v2287 = vmul.f32 1.0, %v2286
    %v2288 = vrcp.pop %v2284
    %v2289 = vmul.f32 1.0, %v2288
    %v2290 = vrcp.pop %v2285
    %v2291 = vmul.f32 1.0, %v2290
    %v2292 = vtanh.pop %v2273
    %v2293 = vmul.f32 %v2289, %v2072
    %v2294 = vmul.f32 %v2287, %v2292
    %v2295 = vadd.f32 %v2293, %v2294
    %v2296 = vtanh.pop %v2295
    %v2297 = vmul.f32 %v2291, %v2296
    %v2298 = vpack.c.bf16 %v2297, %v2297
    %v2299 = vpack.c.bf16 %v2182, %v2182
    %2300 = vmatprep.subr.bf16.mxu0 %v640
    %2301 = vmatpush1.bf16.msra.mxu0 %v639
    %2302 = vmatprep.subr.bf16.mxu0 %v636
    %2303 = vmatpush1.bf16.msra.mxu0 %v635
    %2304 = vmatprep.subr.bf16.mxu0 %v632
    %2305 = vmatpush1.bf16.msra.mxu0 %v631
    %2306 = vmatprep.subr.bf16.mxu0 %v628
    %2307 = vmatpush1.bf16.msra.mxu0 %v627
    %2308 = vmatprep.subr.bf16.mxu0 %v624
    %2309 = vmatpush1.bf16.msra.mxu0 %v623
    %2310 = vmatprep.subr.bf16.mxu0 %v620
    %2311 = vmatpush1.bf16.msra.mxu0 %v619
    %2312 = vmatprep.subr.bf16.mxu0 %v616
    %2313 = vmatpush1.bf16.msra.mxu0 %v615
    %2314 = vmatprep.subr.bf16.mxu0 %v612
    %2315 = vmatpush1.bf16.msra.mxu0 %v611
    %2316 = vmatprep.subr.bf16.mxu0 %v672
    %2317 = vmatpush2.bf16.msra.mxu0 %v671
    %2318 = vmatprep.subr.bf16.mxu0 %v668
    %2319 = vmatpush2.bf16.msra.mxu0 %v667
    %2320 = vmatprep.subr.bf16.mxu0 %v664
    %2321 = vmatpush2.bf16.msra.mxu0 %v663
    %2322 = vmatprep.subr.bf16.mxu0 %v660
    %2323 = vmatpush2.bf16.msra.mxu0 %v659
    %2324 = vmatprep.subr.bf16.mxu0 %v656
    %2325 = vmatpush2.bf16.msra.mxu0 %v655
    %2326 = vmatprep.subr.bf16.mxu0 %v652
    %2327 = vmatpush2.bf16.msra.mxu0 %v651
    %2328 = vmatprep.subr.bf16.mxu0 %v648
    %2329 = vmatpush2.bf16.msra.mxu0 %v647
    %2330 = vmatprep.subr.bf16.mxu0 %v644
    %2331 = vmatpush2.bf16.msra.mxu0 %v643
    %2332 = vmatprep.mubr.bf16.mxu0 %v2299
    %2333 = vmatmul.mubr.bf16.gmra.mxu0 %v2298
    %v2334 = vpop.f32.mrf.mxu0
    %v2335 = vadd.f32 %v402, %v2334
    %v2336 = vpop.f32.mrf.mxu0
    %v2337 = vadd.f32 %v406, %v2336
    %v2338 = vpop.f32.mrf.mxu0
    %v2339 = vpop.f32.mrf.mxu0
    %2340 = vdwg.mxu0
    %2341 = vmatprep.subr.bf16.mxu0 %v642
    %2342 = vmatpush1.bf16.msra.mxu0 %v641
    %2343 = vmatprep.subr.bf16.mxu0 %v638
    %2344 = vmatpush1.bf16.msra.mxu0 %v637
    %2345 = vmatprep.subr.bf16.mxu0 %v634
    %2346 = vmatpush1.bf16.msra.mxu0 %v633
    %2347 = vmatprep.subr.bf16.mxu0 %v630
    %2348 = vmatpush1.bf16.msra.mxu0 %v629
    %2349 = vmatprep.subr.bf16.mxu0 %v626
    %2350 = vmatpush1.bf16.msra.mxu0 %v625
    %2351 = vmatprep.subr.bf16.mxu0 %v622
    %2352 = vmatpush1.bf16.msra.mxu0 %v621
    %2353 = vmatprep.subr.bf16.mxu0 %v618
    %2354 = vmatpush1.bf16.msra.mxu0 %v617
    %2355 = vmatprep.subr.bf16.mxu0 %v614
    %2356 = vmatpush1.bf16.msra.mxu0 %v613
    %2357 = vmatprep.subr.bf16.mxu0 %v674
    %2358 = vmatpush2.bf16.msra.mxu0 %v673
    %2359 = vmatprep.subr.bf16.mxu0 %v670
    %2360 = vmatpush2.bf16.msra.mxu0 %v669
    %2361 = vmatprep.subr.bf16.mxu0 %v666
    %2362 = vmatpush2.bf16.msra.mxu0 %v665
    %2363 = vmatprep.subr.bf16.mxu0 %v662
    %2364 = vmatpush2.bf16.msra.mxu0 %v661
    %2365 = vmatprep.subr.bf16.mxu0 %v658
    %2366 = vmatpush2.bf16.msra.mxu0 %v657
    %2367 = vmatprep.subr.bf16.mxu0 %v654
    %2368 = vmatpush2.bf16.msra.mxu0 %v653
    %2369 = vmatprep.subr.bf16.mxu0 %v650
    %2370 = vmatpush2.bf16.msra.mxu0 %v649
    %2371 = vmatprep.subr.bf16.mxu0 %v646
    %2372 = vmatpush2.bf16.msra.mxu0 %v645
    %2373 = vmatprep.mubr.bf16.mxu0 %v2299
    %2374 = vmatmul.mubr.bf16.gmra.mxu0 %v2298
    %v2375 = vpop.f32.mrf.mxu0
    %v2376 = vadd.f32 %v410, %v2375
    %v2377 = vpop.f32.mrf.mxu0
    %v2378 = vadd.f32 %v414, %v2377
    %v2379 = vpop.f32.mrf.mxu0
    %v2380 = vpop.f32.mrf.mxu0
    %2381 = vdwg.mxu0
    %v2382 = vxor.u32 %v2335, 2147483648
    %v2383 = vxor.u32 %v2337, 2147483648
    %v2384 = vxor.u32 %v2376, 2147483648
    %v2385 = vmul.f32 %v2382, 1.442695
    %v2386 = vpow.pop %v2385
    %v2387 = vmul.f32 %v2383, 1.442695
    %v2388 = vpow.pop %v2387
    %v2389 = vmul.f32 %v2384, 1.442695
    %v2390 = vpow.pop %v2389
    %v2391 = vadd.f32 %v2386, 1.0
    %v2392 = vadd.f32 %v2388, 1.0
    %v2393 = vadd.f32 %v2390, 1.0
    %v2394 = vrcp.pop %v2391
    %v2395 = vmul.f32 1.0, %v2394
    %v2396 = vrcp.pop %v2392
    %v2397 = vmul.f32 1.0, %v2396
    %v2398 = vrcp.pop %v2393
    %v2399 = vmul.f32 1.0, %v2398
    %v2400 = vtanh.pop %v2378
    %v2401 = vmul.f32 %v2397, %v2180
    %v2402 = vmul.f32 %v2395, %v2400
    %v2403 = vadd.f32 %v2401, %v2402
    %v2404 = vtanh.pop %v2403
    %v2405 = vmul.f32 %v2399, %v2404
    %v2406 = vpack.c.bf16 %v2405, %v2405
    %v2407 = vld [vmem:[%s4] sm:$0xf]
    %v2408 = vld [vmem:[%s4 + $0x4] sm:$0xf]
    %v2409 = vld [vmem:[%s4 + $0x8] sm:$0xf]
    %v2410 = vld [vmem:[%s4 + $0xc] sm:$0xf]
    %v2411 = vld [vmem:[%s4 + $0x10] sm:$0xf]
    %v2412 = vld [vmem:[%s4 + $0x14] sm:$0xf]
    %v2413 = vld [vmem:[%s4 + $0x18] sm:$0xf]
    %v2414 = vld [vmem:[%s4 + $0x1c] sm:$0xf]
    %v2415 = vld [vmem:[%s4 + $0x20] sm:$0xf]
    %v2416 = vld [vmem:[%s4 + $0x24] sm:$0xf]
    %v2417 = vld [vmem:[%s4 + $0x28] sm:$0xf]
    %v2418 = vld [vmem:[%s4 + $0x2c] sm:$0xf]
    %v2419 = vld [vmem:[%s4 + $0x30] sm:$0xf]
    %v2420 = vld [vmem:[%s4 + $0x34] sm:$0xf]
    %v2421 = vld [vmem:[%s4 + $0x38] sm:$0xf]
    %v2422 = vld [vmem:[%s4 + $0x3c] sm:$0xf]
    %v2423 = vld [vmem:[%s5] sm:$0x1]
    %v2425 = vlaneseq
    %v2426 = vshrl.u32 %v2425, 7
    %v2427 = vsub.s32 0, %v2426
    %v2428 = vrot.slane %v2423, %v2427
    %v2446 = vunpack.c.l.b16 %v2407
    %v2447 = vunpack.c.l.b16 %v2408
    %v2448 = vunpack.c.l.b16 %v2409
    %v2449 = vunpack.c.l.b16 %v2410
    %v2450 = vunpack.c.l.b16 %v2411
    %v2451 = vunpack.c.l.b16 %v2412
    %v2452 = vunpack.c.l.b16 %v2413
    %v2453 = vunpack.c.l.b16 %v2414
    %v2454 = vunpack.c.l.b16 %v2415
    %v2455 = vunpack.c.l.b16 %v2416
    %v2456 = vunpack.c.l.b16 %v2417
    %v2457 = vunpack.c.l.b16 %v2418
    %v2458 = vunpack.c.l.b16 %v2419
    %v2459 = vunpack.c.l.b16 %v2420
    %v2460 = vunpack.c.l.b16 %v2421
    %v2461 = vunpack.c.l.b16 %v2422
    %v2462 = vpack.c.b16 %v2447, %v2446
    %v2463 = vpack.c.b16 %v2449, %v2448
    %v2464 = vpack.c.b16 %v2451, %v2450
    %v2465 = vpack.c.b16 %v2453, %v2452
    %v2466 = vpack.c.b16 %v2455, %v2454
    %v2467 = vpack.c.b16 %v2457, %v2456
    %v2468 = vpack.c.b16 %v2459, %v2458
    %v2469 = vpack.c.b16 %v2461, %v2460
    %2478 = vmatprep.subr.bf16.mxu0 0
    %2479 = vmatpush1.bf16.msra.mxu0 %v2469
    %2480 = vmatprep.subr.bf16.mxu0 0
    %2481 = vmatpush1.bf16.msra.mxu0 %v2468
    %2482 = vmatprep.subr.bf16.mxu0 0
    %2483 = vmatpush1.bf16.msra.mxu0 %v2467
    %2484 = vmatprep.subr.bf16.mxu0 0
    %2485 = vmatpush1.bf16.msra.mxu0 %v2466
    %2486 = vmatprep.subr.bf16.mxu0 0
    %2487 = vmatpush1.bf16.msra.mxu0 %v2465
    %2488 = vmatprep.subr.bf16.mxu0 0
    %2489 = vmatpush1.bf16.msra.mxu0 %v2464
    %2490 = vmatprep.subr.bf16.mxu0 0
    %2491 = vmatpush1.bf16.msra.mxu0 %v2463
    %2492 = vmatprep.subr.bf16.mxu0 0
    %2493 = vmatpush1.bf16.msra.mxu0 %v2462
    %2494 = vmatprep.subr.bf16.mxu0 0
    %2495 = vmatpush2.bf16.msra.mxu0 0
    %2496 = vmatprep.subr.bf16.mxu0 0
    %2497 = vmatpush2.bf16.msra.mxu0 0
    %2498 = vmatprep.subr.bf16.mxu0 0
    %2499 = vmatpush2.bf16.msra.mxu0 0
    %2500 = vmatprep.subr.bf16.mxu0 0
    %2501 = vmatpush2.bf16.msra.mxu0 0
    %2502 = vmatprep.subr.bf16.mxu0 0
    %2503 = vmatpush2.bf16.msra.mxu0 0
    %2504 = vmatprep.subr.bf16.mxu0 0
    %2505 = vmatpush2.bf16.msra.mxu0 0
    %2506 = vmatprep.subr.bf16.mxu0 0
    %2507 = vmatpush2.bf16.msra.mxu0 0
    %2508 = vmatprep.subr.bf16.mxu0 0
    %2509 = vmatpush2.bf16.msra.mxu0 0
    %2510 = vmatprep.mubr.bf16.mxu0 0
    %2511 = vmatmul.mubr.bf16.gmra.mxu0 %v2406
    %v2512 = vpop.f32.mrf.mxu0
    %v2513 = vadd.f32 %v2428, %v2512
    %v2514 = vpop.f32.mrf.mxu0
    %v2515 = vpop.f32.mrf.mxu0
    %v2516 = vpop.f32.mrf.mxu0
    %2517 = vdwg.mxu0
    %2518 = vst [vmem:[#allocation2] sm:$0xff] %v2513
    // Predicated region
    $region26: #{model_forward.1} parent=1 // pred_check
      _
    $region27: #{model_forward.1} parent=1 // pred_check_branch
      %2520 = sbr.rel (0) target = $region29
    $region28: #{model_forward.1} parent=1 // pred_region
      %s2522 = ssub.s32 128, 128
      %2523 = vsyncadd [#allocation3], %s2522
      %s2525 = sshll.u32 [#allocation2], 4
      %s2526 = int_to_ptr.vmem [resolvable:$true] %s2525
      %2528 = dma.vmem_to_hbm [thread:$0]  %s2526, 128, %s6, [#allocation3]
    $region29: #{model_forward.1} parent=1 // pred_fallthru
      _
    // Predicated region
    $region30: #{model_forward.1} parent=1 // pred_check
      _
    $region31: #{model_forward.1} parent=1 // pred_check_branch
      %2530 = sbr.rel (0) target = $region33
    $region32: #{model_forward.1} parent=1 // pred_region
      %2531 = dma.done [#allocation3], 128
    $region33: #{model_forward.1} parent=1 // pred_fallthru
      _
    %2532 = vsyncpa [#allocation3], 1

</llo_original>
